<compile_context>
chip_gen: v6e
topology: v6e:2x2x1
jax: 0.10.0
libtpu: 0.0.40
codegen_flags: <defaults>
</compile_context>

<pallas_src>
import jax
import jax.numpy as jnp
from jax.experimental import pallas as pl
from jax.experimental.pallas import tpu as pltpu

# Small, forward-consistent hyperparameters.
B = 2     # batch
T = 6     # decoder sequence length
S = 10    # encoder sequence length
E = 16    # embedding_dim
H = 32    # num_hidden_dim (unidirectional -> output_size == H)
C = 48    # num_classes (multiple of 8 so the slab sections stay tile-aligned)
L = 3     # num_rnn_layers
G = 4 * H                 # gate width per layer (= 128 lanes)
CP = 128                  # class dim padded to a full 128-lane tile
NEG = -1e30               # bias for padded logit lanes (drives them to ~-inf)

# Packed weight-slab row layout (all sections 8-row aligned; every row 128 lanes).
B0_ROW = C                # b0
B1_ROW = C + 1            # b1
B2_ROW = C + 2            # b2
BFC_ROW = C + 3           # fc bias (padded cols = NEG)
WFC_ROW = C + 8           # fc weight (H rows)
SLAB_ROWS = C + 8 + H     # = 88


def _log_softmax(x):
    m = jnp.max(x, axis=-1, keepdims=True)
    s = jnp.sum(jnp.exp(x - m), axis=-1, keepdims=True)
    return x - (m + jnp.log(s))


def decoder_kernel(tok_ref, slab_ref, wbig_ref, h0_ref, c0_ref,
                   enc_ref, enct_ref, out_ref):
    # ---- hoisted: fused embedding + layer-0 input projection (one MXU pass) ----
    # onehot(T*B, C) @ (emb @ W_ih0)(C, 4H) + b0 -> (T*B, 4H); no (T*B, E)
    # intermediate is ever materialized.
    # TODO(synk): token ids outside [0, C) yield an all-zero embedding row here,
    #             whereas the PyTorch gather would index out of range.
    tok = tok_ref[...]                                          # (T*B, 1) int32, row t*B+b
    cls = jax.lax.broadcasted_iota(jnp.int32, (T * B, C), 1)
    onehot = (tok == cls).astype(jnp.float32)                   # (T*B, C)

    embw0 = slab_ref[pl.ds(0, C), :]                            # (C, 4H)
    b0 = slab_ref[pl.ds(B0_ROW, 1), :]                          # (1, 4H)
    b1 = slab_ref[pl.ds(B1_ROW, 1), :]
    b2 = slab_ref[pl.ds(B2_ROW, 1), :]
    bfc = slab_ref[pl.ds(BFC_ROW, 1), :]                        # (1, CP)
    wfc = slab_ref[pl.ds(WFC_ROW, H), :]                        # (H, CP)

    xproj = jnp.dot(onehot, embw0,
                    preferred_element_type=jnp.float32) + b0    # (T*B, 4H)

    # Hoisted full-width per-timestep addend for the wavefront matmul:
    # columns [0,4H): layer-0 x-projection at time t (b0 already folded),
    # [4H,8H): b1, [8H,12H): b2.
    addend = jnp.concatenate(
        [xproj.reshape(T, B, G),
         jnp.broadcast_to(b1[None], (T, B, G)),
         jnp.broadcast_to(b2[None], (T, B, G))], axis=-1)       # (T, B, 12H)

    # ---- wavefronted 3-layer unidirectional LSTM (PyTorch gate order i,f,g,o) ----
    # gates[:, l*4H:(l+1)*4H] = input_l @ W_ih_l + h_l @ W_hh_l + b_l, where
    # input_0 comes from `addend` and input_{1,2} = previous layer's h, routed
    # through the block matrix wbig.
    wbig = wbig_ref[...]                                        # (3H, 12H)
    hs = [h0_ref[l] for l in range(L)]                          # each (B, H)
    cs = [c0_ref[l] for l in range(L)]
    outs = [None] * T                                           # last-layer outputs per t
    for w in range(T + L - 1):                                  # static unroll (8 steps)
        h3 = jnp.concatenate(hs, axis=-1)                       # (B, 3H)
        gates = jnp.dot(h3, wbig, preferred_element_type=jnp.float32) \
            + addend[min(w, T - 1)]                             # (B, 12H)
        # Full-width activations: 1 sigmoid + 1 tanh over all active layers'
        # gate columns per wavefront step; extraction below is lane realignment.
        sig = jax.nn.sigmoid(gates)
        th = jnp.tanh(gates)
        for l in range(L):
            t = w - l
            if 0 <= t < T:                                      # static activity mask
                base = l * G
                i_g = sig[:, base:base + H]
                f_g = sig[:, base + H:base + 2 * H]
                g_g = th[:, base + 2 * H:base + 3 * H]
                o_g = sig[:, base + 3 * H:base + 4 * H]
                cs[l] = f_g * cs[l] + i_g * g_g
                hs[l] = o_g * jnp.tanh(cs[l])
                if l == L - 1:
                    outs[t] = hs[l]
        # TODO(synk): inter-layer dropout (p=0.3) only applies in train mode.

    # ---- LAS dot-product attention: softmax(Q K^T) V (no in-kernel transposes) ----
    rnn_bth = jnp.stack(outs, axis=1)                           # (B, T, H)
    score = jnp.einsum('bth,bhs->bts', rnn_bth, enct_ref[...],
                       preferred_element_type=jnp.float32)      # (B, T, S)
    score = score - jnp.max(score, axis=-1, keepdims=True)
    p = jnp.exp(score)
    attn = p / jnp.sum(p, axis=-1, keepdims=True)
    context = jnp.einsum('bts,bsh->bth', attn, enc_ref[...],
                         preferred_element_type=jnp.float32)    # (B, T, H)

    # ---- fused fc(tanh(.)) + log_softmax, BLOCK-order output ----
    # Rows 0..B*T-1 = rnn branch (b-major b*T+t), rows B*T..2*B*T-1 = context
    # branch; the PyTorch cat/view interleave happens in the wrapper.  One MXU
    # pass, one log_softmax, one lane-dense (2*B*T, 128) store; padded logit
    # lanes carry a ~-inf bias and are ignored by the max/sum.
    z = jnp.tanh(jnp.concatenate(
        [rnn_bth.reshape(B * T, H), context.reshape(B * T, H)], axis=0))
    logits = jnp.dot(z, wfc, preferred_element_type=jnp.float32) + bfc
    out_ref[...] = _log_softmax(logits)


@jax.jit
def decoder_forward(tokens, h0, c0, encoder_outputs, params):
    (emb, wih0, whh0, b0, wih1, whh1, b1, wih2, whh2, b2, wfc, bfc) = params
    # TODO(synk): in a decode loop these folds should be hoisted out of the
    #             per-step call (weights are static) and h/c carried via
    #             input_output_aliases across pallas_calls.
    # Fold the embedding table into the layer-0 input projection.
    embw0 = jnp.dot(emb, wih0)                                  # (C, 4H)
    # Pad the class dim to a full 128-lane tile; padded columns get a ~-inf bias.
    wfc_p = jnp.pad(wfc, ((0, 0), (0, CP - C)))
    bfc_p = jnp.pad(bfc, ((0, 0), (0, CP - C)), constant_values=NEG)
    # One packed (88,128) slab -> one input DMA instead of 11 tiny ones.
    slab = jnp.concatenate([
        embw0,                                                  # rows [0, C)
        b0, b1, b2, bfc_p,                                      # rows C .. C+3
        jnp.zeros((4, CP), jnp.float32),                        # pad to 8-row tile
        wfc_p,                                                  # rows [C+8, C+8+H)
    ], axis=0)
    assert slab.shape == (SLAB_ROWS, CP)
    # Block matrix for the layer-wavefront recurrence: (3H, 12H).
    z4 = jnp.zeros((H, G), jnp.float32)
    wbig = jnp.concatenate([
        jnp.concatenate([whh0, wih1, z4], axis=1),
        jnp.concatenate([z4, whh1, wih2], axis=1),
        jnp.concatenate([z4, z4, whh2], axis=1),
    ], axis=0)
    # Encoder outputs in both orientations so neither attention einsum transposes.
    enc_t = jnp.swapaxes(encoder_outputs, 1, 2)                 # (B, H, S)
    # t-major token rows (t*B + b) to match the hoisted layer-0 projection layout.
    tok = tokens.T.reshape(T * B, 1)

    vmem = pl.BlockSpec(memory_space=pltpu.MemorySpace.VMEM)
    out = pl.pallas_call(
        decoder_kernel,
        out_shape=jax.ShapeDtypeStruct((2 * B * T, CP), jnp.float32),
        in_specs=[vmem] * 7,
        out_specs=vmem,
    )(tok, slab, wbig, h0, c0, encoder_outputs, enc_t)
    # Block-order kernel output -> PyTorch cat/view row interleave + class-pad
    # strip; XLA fuses this small permute with the slice.
    return out.reshape(2, B * T, CP).transpose(1, 0, 2).reshape(2 * B * T, CP)[:, :C]


def reference_forward(tokens, h0, c0, enc, params):
    """Pure-JAX reference mirroring the PyTorch forward semantics."""
    (emb, wih0, whh0, b0, wih1, whh1, b1, wih2, whh2, b2, wfc, bfc) = params
    seq = emb[tokens]  # (B, T, E)
    for l, (wih, whh, b) in enumerate(((wih0, whh0, b0),
                                       (wih1, whh1, b1),
                                       (wih2, whh2, b2))):
        h, c = h0[l], c0[l]
        outs = []
        for t in range(T):
            gates = seq[:, t, :] @ wih + h @ whh + b
            i_g = jax.nn.sigmoid(gates[:, :H])
            f_g = jax.nn.sigmoid(gates[:, H:2 * H])
            g_g = jnp.tanh(gates[:, 2 * H:3 * H])
            o_g = jax.nn.sigmoid(gates[:, 3 * H:])
            c = f_g * c + i_g * g_g
            h = o_g * jnp.tanh(c)
            outs.append(h[:, None, :])
        seq = jnp.concatenate(outs, axis=1)
    score = jnp.einsum('bth,bsh->bts', seq, enc)
    attn = jax.nn.softmax(score, axis=-1)
    context = jnp.einsum('bts,bsh->bth', attn, enc)
    cat = jnp.concatenate([seq, context], axis=2).reshape(-1, H)
    logits = jnp.tanh(cat) @ wfc + bfc
    return jax.nn.log_softmax(logits, axis=1)


if __name__ == "__main__":
    key = jax.random.PRNGKey(0)
    ks = jax.random.split(key, 16)
    sc = 0.1
    emb  = jax.random.normal(ks[0],  (C, E),      jnp.float32) * sc
    wih0 = jax.random.normal(ks[1],  (E, 4 * H),  jnp.float32) * sc
    whh0 = jax.random.normal(ks[2],  (H, 4 * H),  jnp.float32) * sc
    b0   = jax.random.normal(ks[3],  (1, 4 * H),  jnp.float32) * sc
    wih1 = jax.random.normal(ks[4],  (H, 4 * H),  jnp.float32) * sc
    whh1 = jax.random.normal(ks[5],  (H, 4 * H),  jnp.float32) * sc
    b1   = jax.random.normal(ks[6],  (1, 4 * H),  jnp.float32) * sc
    wih2 = jax.random.normal(ks[7],  (H, 4 * H),  jnp.float32) * sc
    whh2 = jax.random.normal(ks[8],  (H, 4 * H),  jnp.float32) * sc
    b2   = jax.random.normal(ks[9],  (1, 4 * H),  jnp.float32) * sc
    wfc  = jax.random.normal(ks[10], (H, C),      jnp.float32) * sc
    bfc  = jax.random.normal(ks[11], (1, C),      jnp.float32) * sc
    params = (emb, wih0, whh0, b0, wih1, whh1, b1, wih2, whh2, b2, wfc, bfc)

    tokens = jax.random.randint(ks[12], (B, T), 0, C, dtype=jnp.int32)
    # Token ids must lie in [0, C): the one-hot embedding zeroes OOB ids instead
    # of faulting like a gather would.
    assert int(tokens.min()) >= 0 and int(tokens.max()) < C
    h0  = jax.random.normal(ks[13], (L, B, H), jnp.float32) * sc
    c0  = jax.random.normal(ks[14], (L, B, H), jnp.float32) * sc
    enc = jax.random.normal(ks[15], (B, S, H), jnp.float32)

    out = decoder_forward(tokens, h0, c0, enc, params)
    out = jax.block_until_ready(out)

    ref = reference_forward(tokens, h0, c0, enc, params)
    assert out.shape == (2 * B * T, C), out.shape
    assert bool(jnp.all(jnp.isfinite(out)))
    assert float(jnp.max(jnp.abs(out - ref))) < 1e-2

    print("KERNEL_OK")
</pallas_src>

<mosaic_0001>
module attributes {stable_mosaic.version = 11 : i64} {
  func.func @decoder_kernel(%arg0: memref<12x1xi32, #tpu.memory_space<vmem>>, %arg1: memref<88x128xf32, #tpu.memory_space<vmem>>, %arg2: memref<96x384xf32, #tpu.memory_space<vmem>>, %arg3: memref<3x2x32xf32, #tpu.memory_space<vmem>>, %arg4: memref<3x2x32xf32, #tpu.memory_space<vmem>>, %arg5: memref<2x10x32xf32, #tpu.memory_space<vmem>>, %arg6: memref<2x32x10xf32, #tpu.memory_space<vmem>>, %arg7: memref<24x128xf32, #tpu.memory_space<vmem>>) attributes {dimension_semantics = [], scalar_prefetch = 0 : i64, scratch_operands = 0 : i64, tpu.core_type = #tpu.core_type<tc>} {
    %c0 = arith.constant 0 : index
    %c0_0 = arith.constant 0 : index
    %0 = vector.load %arg0[%c0, %c0_0] : memref<12x1xi32, #tpu.memory_space<vmem>>, vector<12x1xi32>
    %1 = tpu.iota {dimensions = array<i32: 1>} : vector<12x48xi32>
    %2 = vector.broadcast %0 : vector<12x1xi32> to vector<12x48xi32>
    %3 = arith.cmpi eq, %2, %1 : vector<12x48xi32>
    %4 = arith.extui %3 : vector<12x48xi1> to vector<12x48xi32>
    %5 = arith.sitofp %4 : vector<12x48xi32> to vector<12x48xf32>
    %c0_1 = arith.constant 0 : index
    %c0_2 = arith.constant 0 : index
    %6 = vector.load %arg1[%c0_1, %c0_2] : memref<88x128xf32, #tpu.memory_space<vmem>>, vector<48x128xf32>
    %c48 = arith.constant 48 : index
    %c0_3 = arith.constant 0 : index
    %7 = vector.load %arg1[%c48, %c0_3] : memref<88x128xf32, #tpu.memory_space<vmem>>, vector<1x128xf32>
    %c49 = arith.constant 49 : index
    %c0_4 = arith.constant 0 : index
    %8 = vector.load %arg1[%c49, %c0_4] : memref<88x128xf32, #tpu.memory_space<vmem>>, vector<1x128xf32>
    %c50 = arith.constant 50 : index
    %c0_5 = arith.constant 0 : index
    %9 = vector.load %arg1[%c50, %c0_5] : memref<88x128xf32, #tpu.memory_space<vmem>>, vector<1x128xf32>
    %c51 = arith.constant 51 : index
    %c0_6 = arith.constant 0 : index
    %10 = vector.load %arg1[%c51, %c0_6] : memref<88x128xf32, #tpu.memory_space<vmem>>, vector<1x128xf32>
    %c56 = arith.constant 56 : index
    %c0_7 = arith.constant 0 : index
    %11 = vector.load %arg1[%c56, %c0_7] : memref<88x128xf32, #tpu.memory_space<vmem>>, vector<32x128xf32>
    %cst = arith.constant dense<0.000000e+00> : vector<12x128xf32>
    %12 = tpu.matmul %5, %6, %cst {dimension_numbers = #tpu.dot_dimension_numbers<[1], [0], [0], [1], [0, 0, 1, 1], [], []>} : vector<12x48xf32>, vector<48x128xf32>, vector<12x128xf32> -> vector<12x128xf32>
    %13 = vector.broadcast %7 : vector<1x128xf32> to vector<12x128xf32>
    %14 = arith.addf %12, %13 : vector<12x128xf32>
    %15 = vector.shape_cast %14 : vector<12x128xf32> to vector<6x2x128xf32>
    %16 = vector.shape_cast %8 : vector<1x128xf32> to vector<1x1x128xf32>
    %17 = vector.shape_cast %16 : vector<1x1x128xf32> to vector<1x1x128xf32>
    %18 = vector.broadcast %17 : vector<1x1x128xf32> to vector<6x2x128xf32>
    %19 = vector.shape_cast %9 : vector<1x128xf32> to vector<1x1x128xf32>
    %20 = vector.shape_cast %19 : vector<1x1x128xf32> to vector<1x1x128xf32>
    %21 = vector.broadcast %20 : vector<1x1x128xf32> to vector<6x2x128xf32>
    %22 = tpu.concatenate %15, %18, %21 in 2 : vector<6x2x128xf32>, vector<6x2x128xf32>, vector<6x2x128xf32> -> vector<6x2x384xf32>
    %c0_8 = arith.constant 0 : index
    %c0_9 = arith.constant 0 : index
    %23 = vector.load %arg2[%c0_8, %c0_9] : memref<96x384xf32, #tpu.memory_space<vmem>>, vector<96x384xf32>
    %c0_10 = arith.constant 0 : index
    %c0_11 = arith.constant 0 : index
    %c0_12 = arith.constant 0 : index
    %24 = vector.load %arg3[%c0_10, %c0_11, %c0_12] : memref<3x2x32xf32, #tpu.memory_space<vmem>>, vector<1x2x32xf32>
    %25 = vector.shape_cast %24 : vector<1x2x32xf32> to vector<2x32xf32>
    %c1 = arith.constant 1 : index
    %c0_13 = arith.constant 0 : index
    %c0_14 = arith.constant 0 : index
    %26 = vector.load %arg3[%c1, %c0_13, %c0_14] : memref<3x2x32xf32, #tpu.memory_space<vmem>>, vector<1x2x32xf32>
    %27 = vector.shape_cast %26 : vector<1x2x32xf32> to vector<2x32xf32>
    %c2 = arith.constant 2 : index
    %c0_15 = arith.constant 0 : index
    %c0_16 = arith.constant 0 : index
    %28 = vector.load %arg3[%c2, %c0_15, %c0_16] : memref<3x2x32xf32, #tpu.memory_space<vmem>>, vector<1x2x32xf32>
    %29 = vector.shape_cast %28 : vector<1x2x32xf32> to vector<2x32xf32>
    %c0_17 = arith.constant 0 : index
    %c0_18 = arith.constant 0 : index
    %c0_19 = arith.constant 0 : index
    %30 = vector.load %arg4[%c0_17, %c0_18, %c0_19] : memref<3x2x32xf32, #tpu.memory_space<vmem>>, vector<1x2x32xf32>
    %31 = vector.shape_cast %30 : vector<1x2x32xf32> to vector<2x32xf32>
    %c1_20 = arith.constant 1 : index
    %c0_21 = arith.constant 0 : index
    %c0_22 = arith.constant 0 : index
    %32 = vector.load %arg4[%c1_20, %c0_21, %c0_22] : memref<3x2x32xf32, #tpu.memory_space<vmem>>, vector<1x2x32xf32>
    %33 = vector.shape_cast %32 : vector<1x2x32xf32> to vector<2x32xf32>
    %c2_23 = arith.constant 2 : index
    %c0_24 = arith.constant 0 : index
    %c0_25 = arith.constant 0 : index
    %34 = vector.load %arg4[%c2_23, %c0_24, %c0_25] : memref<3x2x32xf32, #tpu.memory_space<vmem>>, vector<1x2x32xf32>
    %35 = vector.shape_cast %34 : vector<1x2x32xf32> to vector<2x32xf32>
    %36 = tpu.concatenate %25, %27, %29 in 1 : vector<2x32xf32>, vector<2x32xf32>, vector<2x32xf32> -> vector<2x96xf32>
    %cst_26 = arith.constant dense<0.000000e+00> : vector<2x384xf32>
    %37 = tpu.matmul %36, %23, %cst_26 {dimension_numbers = #tpu.dot_dimension_numbers<[1], [0], [0], [1], [0, 0, 1, 1], [], []>} : vector<2x96xf32>, vector<96x384xf32>, vector<2x384xf32> -> vector<2x384xf32>
    %38 = vector.extract_strided_slice %22 {offsets = [0, 0, 0], sizes = [1, 2, 384], strides = [1, 1, 1]} : vector<6x2x384xf32> to vector<1x2x384xf32>
    %39 = vector.shape_cast %38 : vector<1x2x384xf32> to vector<2x384xf32>
    %40 = arith.addf %37, %39 : vector<2x384xf32>
    %41 = arith.negf %40 : vector<2x384xf32>
    %42 = math.exp %41 : vector<2x384xf32>
    %cst_27 = arith.constant 1.000000e+00 : f32
    %43 = vector.broadcast %cst_27 : f32 to vector<2x384xf32>
    %44 = arith.addf %43, %42 : vector<2x384xf32>
    %45 = arith.divf %43, %44 : vector<2x384xf32>
    %46 = math.tanh %40 : vector<2x384xf32>
    %47 = vector.extract_strided_slice %45 {offsets = [0, 0], sizes = [2, 32], strides = [1, 1]} : vector<2x384xf32> to vector<2x32xf32>
    %48 = vector.extract_strided_slice %45 {offsets = [0, 32], sizes = [2, 32], strides = [1, 1]} : vector<2x384xf32> to vector<2x32xf32>
    %49 = vector.extract_strided_slice %46 {offsets = [0, 64], sizes = [2, 32], strides = [1, 1]} : vector<2x384xf32> to vector<2x32xf32>
    %50 = vector.extract_strided_slice %45 {offsets = [0, 96], sizes = [2, 32], strides = [1, 1]} : vector<2x384xf32> to vector<2x32xf32>
    %51 = arith.mulf %48, %31 : vector<2x32xf32>
    %52 = arith.mulf %47, %49 : vector<2x32xf32>
    %53 = arith.addf %51, %52 : vector<2x32xf32>
    %54 = math.tanh %53 : vector<2x32xf32>
    %55 = arith.mulf %50, %54 : vector<2x32xf32>
    %56 = tpu.concatenate %55, %27, %29 in 1 : vector<2x32xf32>, vector<2x32xf32>, vector<2x32xf32> -> vector<2x96xf32>
    %cst_28 = arith.constant dense<0.000000e+00> : vector<2x384xf32>
    %57 = tpu.matmul %56, %23, %cst_28 {dimension_numbers = #tpu.dot_dimension_numbers<[1], [0], [0], [1], [0, 0, 1, 1], [], []>} : vector<2x96xf32>, vector<96x384xf32>, vector<2x384xf32> -> vector<2x384xf32>
    %58 = vector.extract_strided_slice %22 {offsets = [1, 0, 0], sizes = [1, 2, 384], strides = [1, 1, 1]} : vector<6x2x384xf32> to vector<1x2x384xf32>
    %59 = vector.shape_cast %58 : vector<1x2x384xf32> to vector<2x384xf32>
    %60 = arith.addf %57, %59 : vector<2x384xf32>
    %61 = arith.negf %60 : vector<2x384xf32>
    %62 = math.exp %61 : vector<2x384xf32>
    %cst_29 = arith.constant 1.000000e+00 : f32
    %63 = vector.broadcast %cst_29 : f32 to vector<2x384xf32>
    %64 = arith.addf %63, %62 : vector<2x384xf32>
    %65 = arith.divf %63, %64 : vector<2x384xf32>
    %66 = math.tanh %60 : vector<2x384xf32>
    %67 = vector.extract_strided_slice %65 {offsets = [0, 0], sizes = [2, 32], strides = [1, 1]} : vector<2x384xf32> to vector<2x32xf32>
    %68 = vector.extract_strided_slice %65 {offsets = [0, 32], sizes = [2, 32], strides = [1, 1]} : vector<2x384xf32> to vector<2x32xf32>
    %69 = vector.extract_strided_slice %66 {offsets = [0, 64], sizes = [2, 32], strides = [1, 1]} : vector<2x384xf32> to vector<2x32xf32>
    %70 = vector.extract_strided_slice %65 {offsets = [0, 96], sizes = [2, 32], strides = [1, 1]} : vector<2x384xf32> to vector<2x32xf32>
    %71 = arith.mulf %68, %53 : vector<2x32xf32>
    %72 = arith.mulf %67, %69 : vector<2x32xf32>
    %73 = arith.addf %71, %72 : vector<2x32xf32>
    %74 = math.tanh %73 : vector<2x32xf32>
    %75 = arith.mulf %70, %74 : vector<2x32xf32>
    %76 = vector.extract_strided_slice %65 {offsets = [0, 128], sizes = [2, 32], strides = [1, 1]} : vector<2x384xf32> to vector<2x32xf32>
    %77 = vector.extract_strided_slice %65 {offsets = [0, 160], sizes = [2, 32], strides = [1, 1]} : vector<2x384xf32> to vector<2x32xf32>
    %78 = vector.extract_strided_slice %66 {offsets = [0, 192], sizes = [2, 32], strides = [1, 1]} : vector<2x384xf32> to vector<2x32xf32>
    %79 = vector.extract_strided_slice %65 {offsets = [0, 224], sizes = [2, 32], strides = [1, 1]} : vector<2x384xf32> to vector<2x32xf32>
    %80 = arith.mulf %77, %33 : vector<2x32xf32>
    %81 = arith.mulf %76, %78 : vector<2x32xf32>
    %82 = arith.addf %80, %81 : vector<2x32xf32>
    %83 = math.tanh %82 : vector<2x32xf32>
    %84 = arith.mulf %79, %83 : vector<2x32xf32>
    %85 = tpu.concatenate %75, %84, %29 in 1 : vector<2x32xf32>, vector<2x32xf32>, vector<2x32xf32> -> vector<2x96xf32>
    %cst_30 = arith.constant dense<0.000000e+00> : vector<2x384xf32>
    %86 = tpu.matmul %85, %23, %cst_30 {dimension_numbers = #tpu.dot_dimension_numbers<[1], [0], [0], [1], [0, 0, 1, 1], [], []>} : vector<2x96xf32>, vector<96x384xf32>, vector<2x384xf32> -> vector<2x384xf32>
    %87 = vector.extract_strided_slice %22 {offsets = [2, 0, 0], sizes = [1, 2, 384], strides = [1, 1, 1]} : vector<6x2x384xf32> to vector<1x2x384xf32>
    %88 = vector.shape_cast %87 : vector<1x2x384xf32> to vector<2x384xf32>
    %89 = arith.addf %86, %88 : vector<2x384xf32>
    %90 = arith.negf %89 : vector<2x384xf32>
    %91 = math.exp %90 : vector<2x384xf32>
    %cst_31 = arith.constant 1.000000e+00 : f32
    %92 = vector.broadcast %cst_31 : f32 to vector<2x384xf32>
    %93 = arith.addf %92, %91 : vector<2x384xf32>
    %94 = arith.divf %92, %93 : vector<2x384xf32>
    %95 = math.tanh %89 : vector<2x384xf32>
    %96 = vector.extract_strided_slice %94 {offsets = [0, 0], sizes = [2, 32], strides = [1, 1]} : vector<2x384xf32> to vector<2x32xf32>
    %97 = vector.extract_strided_slice %94 {offsets = [0, 32], sizes = [2, 32], strides = [1, 1]} : vector<2x384xf32> to vector<2x32xf32>
    %98 = vector.extract_strided_slice %95 {offsets = [0, 64], sizes = [2, 32], strides = [1, 1]} : vector<2x384xf32> to vector<2x32xf32>
    %99 = vector.extract_strided_slice %94 {offsets = [0, 96], sizes = [2, 32], strides = [1, 1]} : vector<2x384xf32> to vector<2x32xf32>
    %100 = arith.mulf %97, %73 : vector<2x32xf32>
    %101 = arith.mulf %96, %98 : vector<2x32xf32>
    %102 = arith.addf %100, %101 : vector<2x32xf32>
    %103 = math.tanh %102 : vector<2x32xf32>
    %104 = arith.mulf %99, %103 : vector<2x32xf32>
    %105 = vector.extract_strided_slice %94 {offsets = [0, 128], sizes = [2, 32], strides = [1, 1]} : vector<2x384xf32> to vector<2x32xf32>
    %106 = vector.extract_strided_slice %94 {offsets = [0, 160], sizes = [2, 32], strides = [1, 1]} : vector<2x384xf32> to vector<2x32xf32>
    %107 = vector.extract_strided_slice %95 {offsets = [0, 192], sizes = [2, 32], strides = [1, 1]} : vector<2x384xf32> to vector<2x32xf32>
    %108 = vector.extract_strided_slice %94 {offsets = [0, 224], sizes = [2, 32], strides = [1, 1]} : vector<2x384xf32> to vector<2x32xf32>
    %109 = arith.mulf %106, %82 : vector<2x32xf32>
    %110 = arith.mulf %105, %107 : vector<2x32xf32>
    %111 = arith.addf %109, %110 : vector<2x32xf32>
    %112 = math.tanh %111 : vector<2x32xf32>
    %113 = arith.mulf %108, %112 : vector<2x32xf32>
    %114 = vector.extract_strided_slice %94 {offsets = [0, 256], sizes = [2, 32], strides = [1, 1]} : vector<2x384xf32> to vector<2x32xf32>
    %115 = vector.extract_strided_slice %94 {offsets = [0, 288], sizes = [2, 32], strides = [1, 1]} : vector<2x384xf32> to vector<2x32xf32>
    %116 = vector.extract_strided_slice %95 {offsets = [0, 320], sizes = [2, 32], strides = [1, 1]} : vector<2x384xf32> to vector<2x32xf32>
    %117 = vector.extract_strided_slice %94 {offsets = [0, 352], sizes = [2, 32], strides = [1, 1]} : vector<2x384xf32> to vector<2x32xf32>
    %118 = arith.mulf %115, %35 : vector<2x32xf32>
    %119 = arith.mulf %114, %116 : vector<2x32xf32>
    %120 = arith.addf %118, %119 : vector<2x32xf32>
    %121 = math.tanh %120 : vector<2x32xf32>
    %122 = arith.mulf %117, %121 : vector<2x32xf32>
    %123 = tpu.concatenate %104, %113, %122 in 1 : vector<2x32xf32>, vector<2x32xf32>, vector<2x32xf32> -> vector<2x96xf32>
    %cst_32 = arith.constant dense<0.000000e+00> : vector<2x384xf32>
    %124 = tpu.matmul %123, %23, %cst_32 {dimension_numbers = #tpu.dot_dimension_numbers<[1], [0], [0], [1], [0, 0, 1, 1], [], []>} : vector<2x96xf32>, vector<96x384xf32>, vector<2x384xf32> -> vector<2x384xf32>
    %125 = vector.extract_strided_slice %22 {offsets = [3, 0, 0], sizes = [1, 2, 384], strides = [1, 1, 1]} : vector<6x2x384xf32> to vector<1x2x384xf32>
    %126 = vector.shape_cast %125 : vector<1x2x384xf32> to vector<2x384xf32>
    %127 = arith.addf %124, %126 : vector<2x384xf32>
    %128 = arith.negf %127 : vector<2x384xf32>
    %129 = math.exp %128 : vector<2x384xf32>
    %cst_33 = arith.constant 1.000000e+00 : f32
    %130 = vector.broadcast %cst_33 : f32 to vector<2x384xf32>
    %131 = arith.addf %130, %129 : vector<2x384xf32>
    %132 = arith.divf %130, %131 : vector<2x384xf32>
    %133 = math.tanh %127 : vector<2x384xf32>
    %134 = vector.extract_strided_slice %132 {offsets = [0, 0], sizes = [2, 32], strides = [1, 1]} : vector<2x384xf32> to vector<2x32xf32>
    %135 = vector.extract_strided_slice %132 {offsets = [0, 32], sizes = [2, 32], strides = [1, 1]} : vector<2x384xf32> to vector<2x32xf32>
    %136 = vector.extract_strided_slice %133 {offsets = [0, 64], sizes = [2, 32], strides = [1, 1]} : vector<2x384xf32> to vector<2x32xf32>
    %137 = vector.extract_strided_slice %132 {offsets = [0, 96], sizes = [2, 32], strides = [1, 1]} : vector<2x384xf32> to vector<2x32xf32>
    %138 = arith.mulf %135, %102 : vector<2x32xf32>
    %139 = arith.mulf %134, %136 : vector<2x32xf32>
    %140 = arith.addf %138, %139 : vector<2x32xf32>
    %141 = math.tanh %140 : vector<2x32xf32>
    %142 = arith.mulf %137, %141 : vector<2x32xf32>
    %143 = vector.extract_strided_slice %132 {offsets = [0, 128], sizes = [2, 32], strides = [1, 1]} : vector<2x384xf32> to vector<2x32xf32>
    %144 = vector.extract_strided_slice %132 {offsets = [0, 160], sizes = [2, 32], strides = [1, 1]} : vector<2x384xf32> to vector<2x32xf32>
    %145 = vector.extract_strided_slice %133 {offsets = [0, 192], sizes = [2, 32], strides = [1, 1]} : vector<2x384xf32> to vector<2x32xf32>
    %146 = vector.extract_strided_slice %132 {offsets = [0, 224], sizes = [2, 32], strides = [1, 1]} : vector<2x384xf32> to vector<2x32xf32>
    %147 = arith.mulf %144, %111 : vector<2x32xf32>
    %148 = arith.mulf %143, %145 : vector<2x32xf32>
    %149 = arith.addf %147, %148 : vector<2x32xf32>
    %150 = math.tanh %149 : vector<2x32xf32>
    %151 = arith.mulf %146, %150 : vector<2x32xf32>
    %152 = vector.extract_strided_slice %132 {offsets = [0, 256], sizes = [2, 32], strides = [1, 1]} : vector<2x384xf32> to vector<2x32xf32>
    %153 = vector.extract_strided_slice %132 {offsets = [0, 288], sizes = [2, 32], strides = [1, 1]} : vector<2x384xf32> to vector<2x32xf32>
    %154 = vector.extract_strided_slice %133 {offsets = [0, 320], sizes = [2, 32], strides = [1, 1]} : vector<2x384xf32> to vector<2x32xf32>
    %155 = vector.extract_strided_slice %132 {offsets = [0, 352], sizes = [2, 32], strides = [1, 1]} : vector<2x384xf32> to vector<2x32xf32>
    %156 = arith.mulf %153, %120 : vector<2x32xf32>
    %157 = arith.mulf %152, %154 : vector<2x32xf32>
    %158 = arith.addf %156, %157 : vector<2x32xf32>
    %159 = math.tanh %158 : vector<2x32xf32>
    %160 = arith.mulf %155, %159 : vector<2x32xf32>
    %161 = tpu.concatenate %142, %151, %160 in 1 : vector<2x32xf32>, vector<2x32xf32>, vector<2x32xf32> -> vector<2x96xf32>
    %cst_34 = arith.constant dense<0.000000e+00> : vector<2x384xf32>
    %162 = tpu.matmul %161, %23, %cst_34 {dimension_numbers = #tpu.dot_dimension_numbers<[1], [0], [0], [1], [0, 0, 1, 1], [], []>} : vector<2x96xf32>, vector<96x384xf32>, vector<2x384xf32> -> vector<2x384xf32>
    %163 = vector.extract_strided_slice %22 {offsets = [4, 0, 0], sizes = [1, 2, 384], strides = [1, 1, 1]} : vector<6x2x384xf32> to vector<1x2x384xf32>
    %164 = vector.shape_cast %163 : vector<1x2x384xf32> to vector<2x384xf32>
    %165 = arith.addf %162, %164 : vector<2x384xf32>
    %166 = arith.negf %165 : vector<2x384xf32>
    %167 = math.exp %166 : vector<2x384xf32>
    %cst_35 = arith.constant 1.000000e+00 : f32
    %168 = vector.broadcast %cst_35 : f32 to vector<2x384xf32>
    %169 = arith.addf %168, %167 : vector<2x384xf32>
    %170 = arith.divf %168, %169 : vector<2x384xf32>
    %171 = math.tanh %165 : vector<2x384xf32>
    %172 = vector.extract_strided_slice %170 {offsets = [0, 0], sizes = [2, 32], strides = [1, 1]} : vector<2x384xf32> to vector<2x32xf32>
    %173 = vector.extract_strided_slice %170 {offsets = [0, 32], sizes = [2, 32], strides = [1, 1]} : vector<2x384xf32> to vector<2x32xf32>
    %174 = vector.extract_strided_slice %171 {offsets = [0, 64], sizes = [2, 32], strides = [1, 1]} : vector<2x384xf32> to vector<2x32xf32>
    %175 = vector.extract_strided_slice %170 {offsets = [0, 96], sizes = [2, 32], strides = [1, 1]} : vector<2x384xf32> to vector<2x32xf32>
    %176 = arith.mulf %173, %140 : vector<2x32xf32>
    %177 = arith.mulf %172, %174 : vector<2x32xf32>
    %178 = arith.addf %176, %177 : vector<2x32xf32>
    %179 = math.tanh %178 : vector<2x32xf32>
    %180 = arith.mulf %175, %179 : vector<2x32xf32>
    %181 = vector.extract_strided_slice %170 {offsets = [0, 128], sizes = [2, 32], strides = [1, 1]} : vector<2x384xf32> to vector<2x32xf32>
    %182 = vector.extract_strided_slice %170 {offsets = [0, 160], sizes = [2, 32], strides = [1, 1]} : vector<2x384xf32> to vector<2x32xf32>
    %183 = vector.extract_strided_slice %171 {offsets = [0, 192], sizes = [2, 32], strides = [1, 1]} : vector<2x384xf32> to vector<2x32xf32>
    %184 = vector.extract_strided_slice %170 {offsets = [0, 224], sizes = [2, 32], strides = [1, 1]} : vector<2x384xf32> to vector<2x32xf32>
    %185 = arith.mulf %182, %149 : vector<2x32xf32>
    %186 = arith.mulf %181, %183 : vector<2x32xf32>
    %187 = arith.addf %185, %186 : vector<2x32xf32>
    %188 = math.tanh %187 : vector<2x32xf32>
    %189 = arith.mulf %184, %188 : vector<2x32xf32>
    %190 = vector.extract_strided_slice %170 {offsets = [0, 256], sizes = [2, 32], strides = [1, 1]} : vector<2x384xf32> to vector<2x32xf32>
    %191 = vector.extract_strided_slice %170 {offsets = [0, 288], sizes = [2, 32], strides = [1, 1]} : vector<2x384xf32> to vector<2x32xf32>
    %192 = vector.extract_strided_slice %171 {offsets = [0, 320], sizes = [2, 32], strides = [1, 1]} : vector<2x384xf32> to vector<2x32xf32>
    %193 = vector.extract_strided_slice %170 {offsets = [0, 352], sizes = [2, 32], strides = [1, 1]} : vector<2x384xf32> to vector<2x32xf32>
    %194 = arith.mulf %191, %158 : vector<2x32xf32>
    %195 = arith.mulf %190, %192 : vector<2x32xf32>
    %196 = arith.addf %194, %195 : vector<2x32xf32>
    %197 = math.tanh %196 : vector<2x32xf32>
    %198 = arith.mulf %193, %197 : vector<2x32xf32>
    %199 = tpu.concatenate %180, %189, %198 in 1 : vector<2x32xf32>, vector<2x32xf32>, vector<2x32xf32> -> vector<2x96xf32>
    %cst_36 = arith.constant dense<0.000000e+00> : vector<2x384xf32>
    %200 = tpu.matmul %199, %23, %cst_36 {dimension_numbers = #tpu.dot_dimension_numbers<[1], [0], [0], [1], [0, 0, 1, 1], [], []>} : vector<2x96xf32>, vector<96x384xf32>, vector<2x384xf32> -> vector<2x384xf32>
    %201 = vector.extract_strided_slice %22 {offsets = [5, 0, 0], sizes = [1, 2, 384], strides = [1, 1, 1]} : vector<6x2x384xf32> to vector<1x2x384xf32>
    %202 = vector.shape_cast %201 : vector<1x2x384xf32> to vector<2x384xf32>
    %203 = arith.addf %200, %202 : vector<2x384xf32>
    %204 = arith.negf %203 : vector<2x384xf32>
    %205 = math.exp %204 : vector<2x384xf32>
    %cst_37 = arith.constant 1.000000e+00 : f32
    %206 = vector.broadcast %cst_37 : f32 to vector<2x384xf32>
    %207 = arith.addf %206, %205 : vector<2x384xf32>
    %208 = arith.divf %206, %207 : vector<2x384xf32>
    %209 = math.tanh %203 : vector<2x384xf32>
    %210 = vector.extract_strided_slice %208 {offsets = [0, 0], sizes = [2, 32], strides = [1, 1]} : vector<2x384xf32> to vector<2x32xf32>
    %211 = vector.extract_strided_slice %208 {offsets = [0, 32], sizes = [2, 32], strides = [1, 1]} : vector<2x384xf32> to vector<2x32xf32>
    %212 = vector.extract_strided_slice %209 {offsets = [0, 64], sizes = [2, 32], strides = [1, 1]} : vector<2x384xf32> to vector<2x32xf32>
    %213 = vector.extract_strided_slice %208 {offsets = [0, 96], sizes = [2, 32], strides = [1, 1]} : vector<2x384xf32> to vector<2x32xf32>
    %214 = arith.mulf %211, %178 : vector<2x32xf32>
    %215 = arith.mulf %210, %212 : vector<2x32xf32>
    %216 = arith.addf %214, %215 : vector<2x32xf32>
    %217 = math.tanh %216 : vector<2x32xf32>
    %218 = arith.mulf %213, %217 : vector<2x32xf32>
    %219 = vector.extract_strided_slice %208 {offsets = [0, 128], sizes = [2, 32], strides = [1, 1]} : vector<2x384xf32> to vector<2x32xf32>
    %220 = vector.extract_strided_slice %208 {offsets = [0, 160], sizes = [2, 32], strides = [1, 1]} : vector<2x384xf32> to vector<2x32xf32>
    %221 = vector.extract_strided_slice %209 {offsets = [0, 192], sizes = [2, 32], strides = [1, 1]} : vector<2x384xf32> to vector<2x32xf32>
    %222 = vector.extract_strided_slice %208 {offsets = [0, 224], sizes = [2, 32], strides = [1, 1]} : vector<2x384xf32> to vector<2x32xf32>
    %223 = arith.mulf %220, %187 : vector<2x32xf32>
    %224 = arith.mulf %219, %221 : vector<2x32xf32>
    %225 = arith.addf %223, %224 : vector<2x32xf32>
    %226 = math.tanh %225 : vector<2x32xf32>
    %227 = arith.mulf %222, %226 : vector<2x32xf32>
    %228 = vector.extract_strided_slice %208 {offsets = [0, 256], sizes = [2, 32], strides = [1, 1]} : vector<2x384xf32> to vector<2x32xf32>
    %229 = vector.extract_strided_slice %208 {offsets = [0, 288], sizes = [2, 32], strides = [1, 1]} : vector<2x384xf32> to vector<2x32xf32>
    %230 = vector.extract_strided_slice %209 {offsets = [0, 320], sizes = [2, 32], strides = [1, 1]} : vector<2x384xf32> to vector<2x32xf32>
    %231 = vector.extract_strided_slice %208 {offsets = [0, 352], sizes = [2, 32], strides = [1, 1]} : vector<2x384xf32> to vector<2x32xf32>
    %232 = arith.mulf %229, %196 : vector<2x32xf32>
    %233 = arith.mulf %228, %230 : vector<2x32xf32>
    %234 = arith.addf %232, %233 : vector<2x32xf32>
    %235 = math.tanh %234 : vector<2x32xf32>
    %236 = arith.mulf %231, %235 : vector<2x32xf32>
    %237 = tpu.concatenate %218, %227, %236 in 1 : vector<2x32xf32>, vector<2x32xf32>, vector<2x32xf32> -> vector<2x96xf32>
    %cst_38 = arith.constant dense<0.000000e+00> : vector<2x384xf32>
    %238 = tpu.matmul %237, %23, %cst_38 {dimension_numbers = #tpu.dot_dimension_numbers<[1], [0], [0], [1], [0, 0, 1, 1], [], []>} : vector<2x96xf32>, vector<96x384xf32>, vector<2x384xf32> -> vector<2x384xf32>
    %239 = vector.extract_strided_slice %22 {offsets = [5, 0, 0], sizes = [1, 2, 384], strides = [1, 1, 1]} : vector<6x2x384xf32> to vector<1x2x384xf32>
    %240 = vector.shape_cast %239 : vector<1x2x384xf32> to vector<2x384xf32>
    %241 = arith.addf %238, %240 : vector<2x384xf32>
    %242 = arith.negf %241 : vector<2x384xf32>
    %243 = math.exp %242 : vector<2x384xf32>
    %cst_39 = arith.constant 1.000000e+00 : f32
    %244 = vector.broadcast %cst_39 : f32 to vector<2x384xf32>
    %245 = arith.addf %244, %243 : vector<2x384xf32>
    %246 = arith.divf %244, %245 : vector<2x384xf32>
    %247 = math.tanh %241 : vector<2x384xf32>
    %248 = vector.extract_strided_slice %246 {offsets = [0, 128], sizes = [2, 32], strides = [1, 1]} : vector<2x384xf32> to vector<2x32xf32>
    %249 = vector.extract_strided_slice %246 {offsets = [0, 160], sizes = [2, 32], strides = [1, 1]} : vector<2x384xf32> to vector<2x32xf32>
    %250 = vector.extract_strided_slice %247 {offsets = [0, 192], sizes = [2, 32], strides = [1, 1]} : vector<2x384xf32> to vector<2x32xf32>
    %251 = vector.extract_strided_slice %246 {offsets = [0, 224], sizes = [2, 32], strides = [1, 1]} : vector<2x384xf32> to vector<2x32xf32>
    %252 = arith.mulf %249, %225 : vector<2x32xf32>
    %253 = arith.mulf %248, %250 : vector<2x32xf32>
    %254 = arith.addf %252, %253 : vector<2x32xf32>
    %255 = math.tanh %254 : vector<2x32xf32>
    %256 = arith.mulf %251, %255 : vector<2x32xf32>
    %257 = vector.extract_strided_slice %246 {offsets = [0, 256], sizes = [2, 32], strides = [1, 1]} : vector<2x384xf32> to vector<2x32xf32>
    %258 = vector.extract_strided_slice %246 {offsets = [0, 288], sizes = [2, 32], strides = [1, 1]} : vector<2x384xf32> to vector<2x32xf32>
    %259 = vector.extract_strided_slice %247 {offsets = [0, 320], sizes = [2, 32], strides = [1, 1]} : vector<2x384xf32> to vector<2x32xf32>
    %260 = vector.extract_strided_slice %246 {offsets = [0, 352], sizes = [2, 32], strides = [1, 1]} : vector<2x384xf32> to vector<2x32xf32>
    %261 = arith.mulf %258, %234 : vector<2x32xf32>
    %262 = arith.mulf %257, %259 : vector<2x32xf32>
    %263 = arith.addf %261, %262 : vector<2x32xf32>
    %264 = math.tanh %263 : vector<2x32xf32>
    %265 = arith.mulf %260, %264 : vector<2x32xf32>
    %266 = tpu.concatenate %218, %256, %265 in 1 : vector<2x32xf32>, vector<2x32xf32>, vector<2x32xf32> -> vector<2x96xf32>
    %cst_40 = arith.constant dense<0.000000e+00> : vector<2x384xf32>
    %267 = tpu.matmul %266, %23, %cst_40 {dimension_numbers = #tpu.dot_dimension_numbers<[1], [0], [0], [1], [0, 0, 1, 1], [], []>} : vector<2x96xf32>, vector<96x384xf32>, vector<2x384xf32> -> vector<2x384xf32>
    %268 = vector.extract_strided_slice %22 {offsets = [5, 0, 0], sizes = [1, 2, 384], strides = [1, 1, 1]} : vector<6x2x384xf32> to vector<1x2x384xf32>
    %269 = vector.shape_cast %268 : vector<1x2x384xf32> to vector<2x384xf32>
    %270 = arith.addf %267, %269 : vector<2x384xf32>
    %271 = arith.negf %270 : vector<2x384xf32>
    %272 = math.exp %271 : vector<2x384xf32>
    %cst_41 = arith.constant 1.000000e+00 : f32
    %273 = vector.broadcast %cst_41 : f32 to vector<2x384xf32>
    %274 = arith.addf %273, %272 : vector<2x384xf32>
    %275 = arith.divf %273, %274 : vector<2x384xf32>
    %276 = math.tanh %270 : vector<2x384xf32>
    %277 = vector.extract_strided_slice %275 {offsets = [0, 256], sizes = [2, 32], strides = [1, 1]} : vector<2x384xf32> to vector<2x32xf32>
    %278 = vector.extract_strided_slice %275 {offsets = [0, 288], sizes = [2, 32], strides = [1, 1]} : vector<2x384xf32> to vector<2x32xf32>
    %279 = vector.extract_strided_slice %276 {offsets = [0, 320], sizes = [2, 32], strides = [1, 1]} : vector<2x384xf32> to vector<2x32xf32>
    %280 = vector.extract_strided_slice %275 {offsets = [0, 352], sizes = [2, 32], strides = [1, 1]} : vector<2x384xf32> to vector<2x32xf32>
    %281 = arith.mulf %278, %263 : vector<2x32xf32>
    %282 = arith.mulf %277, %279 : vector<2x32xf32>
    %283 = arith.addf %281, %282 : vector<2x32xf32>
    %284 = math.tanh %283 : vector<2x32xf32>
    %285 = arith.mulf %280, %284 : vector<2x32xf32>
    %286 = vector.shape_cast %122 : vector<2x32xf32> to vector<2x1x32xf32>
    %287 = vector.shape_cast %160 : vector<2x32xf32> to vector<2x1x32xf32>
    %288 = vector.shape_cast %198 : vector<2x32xf32> to vector<2x1x32xf32>
    %289 = vector.shape_cast %236 : vector<2x32xf32> to vector<2x1x32xf32>
    %290 = vector.shape_cast %265 : vector<2x32xf32> to vector<2x1x32xf32>
    %291 = vector.shape_cast %285 : vector<2x32xf32> to vector<2x1x32xf32>
    %292 = tpu.concatenate %286, %287, %288, %289, %290, %291 in 1 : vector<2x1x32xf32>, vector<2x1x32xf32>, vector<2x1x32xf32>, vector<2x1x32xf32>, vector<2x1x32xf32>, vector<2x1x32xf32> -> vector<2x6x32xf32>
    %c0_42 = arith.constant 0 : index
    %c0_43 = arith.constant 0 : index
    %c0_44 = arith.constant 0 : index
    %293 = vector.load %arg6[%c0_42, %c0_43, %c0_44] : memref<2x32x10xf32, #tpu.memory_space<vmem>>, vector<2x32x10xf32>
    "tpu.trace_start"() <{level = 10 : i32, message = "bth,bhs->bts"}> : () -> ()
    %cst_45 = arith.constant dense<0.000000e+00> : vector<2x6x10xf32>
    %294 = tpu.matmul %292, %293, %cst_45 {dimension_numbers = #tpu.dot_dimension_numbers<[2], [1], [1], [2], [0, 0, 0, 1, 1, 2], [0], [0]>} : vector<2x6x32xf32>, vector<2x32x10xf32>, vector<2x6x10xf32> -> vector<2x6x10xf32>
    "tpu.trace_stop"() : () -> ()
    %cst_46 = arith.constant dense<0xFF800000> : vector<2x6xf32>
    %295 = vector.multi_reduction <maximumf>, %294, %cst_46 [2] : vector<2x6x10xf32> to vector<2x6xf32>
    %296 = vector.shape_cast %295 : vector<2x6xf32> to vector<2x6x1xf32>
    %297 = vector.broadcast %296 : vector<2x6x1xf32> to vector<2x6x10xf32>
    %298 = arith.subf %294, %297 : vector<2x6x10xf32>
    %299 = math.exp %298 : vector<2x6x10xf32>
    %cst_47 = arith.constant dense<0.000000e+00> : vector<2x6xf32>
    %300 = vector.multi_reduction <add>, %299, %cst_47 [2] : vector<2x6x10xf32> to vector<2x6xf32>
    %301 = vector.shape_cast %300 : vector<2x6xf32> to vector<2x6x1xf32>
    %302 = vector.broadcast %301 : vector<2x6x1xf32> to vector<2x6x10xf32>
    %303 = arith.divf %299, %302 : vector<2x6x10xf32>
    %c0_48 = arith.constant 0 : index
    %c0_49 = arith.constant 0 : index
    %c0_50 = arith.constant 0 : index
    %304 = vector.load %arg5[%c0_48, %c0_49, %c0_50] : memref<2x10x32xf32, #tpu.memory_space<vmem>>, vector<2x10x32xf32>
    "tpu.trace_start"() <{level = 10 : i32, message = "bts,bsh->bth"}> : () -> ()
    %cst_51 = arith.constant dense<0.000000e+00> : vector<2x6x32xf32>
    %305 = tpu.matmul %303, %304, %cst_51 {dimension_numbers = #tpu.dot_dimension_numbers<[2], [1], [1], [2], [0, 0, 0, 1, 1, 2], [0], [0]>} : vector<2x6x10xf32>, vector<2x10x32xf32>, vector<2x6x32xf32> -> vector<2x6x32xf32>
    "tpu.trace_stop"() : () -> ()
    %306 = vector.shape_cast %292 : vector<2x6x32xf32> to vector<12x32xf32>
    %307 = vector.shape_cast %305 : vector<2x6x32xf32> to vector<12x32xf32>
    %308 = tpu.concatenate %306, %307 in 0 : vector<12x32xf32>, vector<12x32xf32> -> vector<24x32xf32>
    %309 = math.tanh %308 : vector<24x32xf32>
    %cst_52 = arith.constant dense<0.000000e+00> : vector<24x128xf32>
    %310 = tpu.matmul %309, %11, %cst_52 {dimension_numbers = #tpu.dot_dimension_numbers<[1], [0], [0], [1], [0, 0, 1, 1], [], []>} : vector<24x32xf32>, vector<32x128xf32>, vector<24x128xf32> -> vector<24x128xf32>
    %311 = vector.broadcast %10 : vector<1x128xf32> to vector<24x128xf32>
    %312 = arith.addf %310, %311 : vector<24x128xf32>
    %cst_53 = arith.constant dense<0xFF800000> : vector<24xf32>
    %313 = vector.multi_reduction <maximumf>, %312, %cst_53 [1] : vector<24x128xf32> to vector<24xf32>
    %314 = vector.shape_cast %313 : vector<24xf32> to vector<24x1xf32>
    %315 = vector.broadcast %314 : vector<24x1xf32> to vector<24x128xf32>
    %316 = arith.subf %312, %315 : vector<24x128xf32>
    %317 = math.exp %316 : vector<24x128xf32>
    %cst_54 = arith.constant dense<0.000000e+00> : vector<24xf32>
    %318 = vector.multi_reduction <add>, %317, %cst_54 [1] : vector<24x128xf32> to vector<24xf32>
    %319 = vector.shape_cast %318 : vector<24xf32> to vector<24x1xf32>
    %320 = math.log %319 : vector<24x1xf32>
    %321 = arith.addf %314, %320 : vector<24x1xf32>
    %322 = vector.broadcast %321 : vector<24x1xf32> to vector<24x128xf32>
    %323 = arith.subf %312, %322 : vector<24x128xf32>
    %c0_55 = arith.constant 0 : index
    %c0_56 = arith.constant 0 : index
    %324 = vector.load %arg7[%c0_55, %c0_56] : memref<24x128xf32, #tpu.memory_space<vmem>>, vector<24x128xf32>
    tpu.vector_store %arg7[%c0_55, %c0_56], %323 {strides = array<i32>} : memref<24x128xf32, #tpu.memory_space<vmem>>, vector<24x128xf32>,
    return
  }
}

</mosaic_0001>

<llo_original>
// kernel: decoder_forward.1
$region0: #{decoder_forward.1}
  #allocation0 [shape = 'u32[]', space=smem, size = 0x4, offset = 0x4, fixed_abs, tag = 'smem constant byte address 0x4 - core index']
  #allocation1 [shape = 'u32[144,128]{1,0:T(1,128)}', space=vmem, size = 0x12000, scoped, tag = 'internal scratch']
  %s0 = inlined_call_operand.vmem [shape: s32[12,1], index: 0, kind: input, shape index: {}]
  %s1 = inlined_call_operand.vmem [shape: f32[88,128], index: 1, kind: input, shape index: {}]
  %s2 = inlined_call_operand.vmem [shape: f32[96,384], index: 2, kind: input, shape index: {}]
  %s3 = inlined_call_operand.vmem [shape: f32[3,2,32], index: 3, kind: input, shape index: {}]
  %s4 = inlined_call_operand.vmem [shape: f32[3,2,32], index: 4, kind: input, shape index: {}]
  %s5 = inlined_call_operand.vmem [shape: f32[2,10,32], index: 5, kind: input, shape index: {}]
  %s6 = inlined_call_operand.vmem [shape: f32[2,32,10], index: 6, kind: input, shape index: {}]
  %s7 = inlined_call_operand.vmem [shape: f32[24,128], index: 7, kind: output, shape index: {}]
  %s8 = sld [smem:[#allocation0]]
  $region38: #{decoder_forward.1} parent=0
    _
  %s10 = ssub.s32 1, %s8
  %s11 = scalar_select 0, %s10, %s8
  // Predicated region
  $region2: #{decoder_forward.1} parent=0 // pred_check
    _
  $region3: #{decoder_forward.1} parent=0 // pred_check_branch
    %13 = sbr.rel (0) target = $region5
  $region4: #{decoder_forward.1} parent=0 // pred_region
    _
  $region5: #{decoder_forward.1} parent=0 // pred_fallthru
    _
  // Predicated region
  $region6: #{decoder_forward.1} parent=0 // pred_check
    _
  $region7: #{decoder_forward.1} parent=0 // pred_check_branch
    %15 = sbr.rel (0) target = $region9
  $region8: #{decoder_forward.1} parent=0 // pred_region
    _
  $region9: #{decoder_forward.1} parent=0 // pred_fallthru
    _
  // Predicated region
  $region10: #{decoder_forward.1} parent=0 // pred_check
    _
  $region11: #{decoder_forward.1} parent=0 // pred_check_branch
    %17 = sbr.rel (0) target = $region13
  $region12: #{decoder_forward.1} parent=0 // pred_region
    _
  $region13: #{decoder_forward.1} parent=0 // pred_fallthru
    _
  // Predicated region
  $region14: #{decoder_forward.1} parent=0 // pred_check
    _
  $region15: #{decoder_forward.1} parent=0 // pred_check_branch
    %19 = sbr.rel (0) target = $region17
  $region16: #{decoder_forward.1} parent=0 // pred_region
    _
  $region17: #{decoder_forward.1} parent=0 // pred_fallthru
    _
  // Predicated region
  $region18: #{decoder_forward.1} parent=0 // pred_check
    _
  $region19: #{decoder_forward.1} parent=0 // pred_check_branch
    %21 = sbr.rel (0) target = $region21
  $region20: #{decoder_forward.1} parent=0 // pred_region
    _
  $region21: #{decoder_forward.1} parent=0 // pred_fallthru
    _
  // Predicated region
  $region22: #{decoder_forward.1} parent=0 // pred_check
    _
  $region23: #{decoder_forward.1} parent=0 // pred_check_branch
    %23 = sbr.rel (0) target = $region25
  $region24: #{decoder_forward.1} parent=0 // pred_region
    _
  $region25: #{decoder_forward.1} parent=0 // pred_fallthru
    _
  // Predicated region
  $region26: #{decoder_forward.1} parent=0 // pred_check
    _
  $region27: #{decoder_forward.1} parent=0 // pred_check_branch
    %25 = sbr.rel (0) target = $region29
  $region28: #{decoder_forward.1} parent=0 // pred_region
    _
  $region29: #{decoder_forward.1} parent=0 // pred_fallthru
    _
  %v26 = vld [vmem:[%s0] sm:$0xff]
  %v27 = vld [vmem:[%s0 + $0x8] sm:$0xf]
  %v28 = vlaneseq
  %v29 = vand.u32 %v28, 127
  %30 = vset.pattern.permute.xlu0 0
  %31 = vperm.xlu0 %30, %v26
  %v32 = vpop.permute.xlu0 %31
  %33 = vset.pattern.permute.xlu0 0
  %34 = vperm.xlu0 %33, %v27
  %v35 = vpop.permute.xlu0 %34
  %vm36 = vcmp.eq.s32.totalorder %v32, %v29
  %vm37 = vcmp.eq.s32.totalorder %v35, %v29
  %v38 = vsel %vm36, 1, 0
  %v39 = vsel %vm37, 1, 0
  %v40 = vcvt.s32.f32 %v38
  %v41 = vcvt.s32.f32 %v39
  %v42 = vld [vmem:[%s1] sm:$0xff]
  %v43 = vld [vmem:[%s1 + $0x8] sm:$0xff]
  %v44 = vld [vmem:[%s1 + $0x10] sm:$0xff]
  %v45 = vld [vmem:[%s1 + $0x18] sm:$0xff]
  %v46 = vld [vmem:[%s1 + $0x20] sm:$0xff]
  %v47 = vld [vmem:[%s1 + $0x28] sm:$0xff]
  %v48 = vld [vmem:[%s1 + $0x30] sm:$0x1]
  %v49 = vld [vmem:[%s1 + $0x31] sm:$0x1]
  %v50 = vld [vmem:[%s1 + $0x32] sm:$0x1]
  %v51 = vld [vmem:[%s1 + $0x33] sm:$0x1]
  %v52 = vld [vmem:[%s1 + $0x38] sm:$0xff]
  %v53 = vld [vmem:[%s1 + $0x40] sm:$0xff]
  %v54 = vld [vmem:[%s1 + $0x48] sm:$0xff]
  %v55 = vld [vmem:[%s1 + $0x50] sm:$0xff]
  %v56 = vlaneseq
  %v57 = vshrl.u32 %v56, 7
  %v58 = vsub.s32 0, %v57
  %v59 = vrot.slane %v48, %v58
  %vm60 = vcmask 392192
  %v62 = vsel %vm60, %v40, 0
  %v65 = vsel %vm60, %v41, 0
  %67 = vmatprep.subr.mxu0 0.0
  %68 = vmatpush1.msra.mxu0 0.0
  %69 = vmatprep.subr.mxu0 0.0
  %70 = vmatpush1.msra.mxu0 0.0
  %71 = vmatprep.subr.mxu0 0.0
  %72 = vmatpush1.msra.mxu0 0.0
  %73 = vmatprep.subr.mxu0 0.0
  %74 = vmatpush1.msra.mxu0 0.0
  %75 = vmatprep.subr.mxu0 0.0
  %76 = vmatpush1.msra.mxu0 0.0
  %77 = vmatprep.subr.mxu0 0.0
  %78 = vmatpush1.msra.mxu0 0.0
  %79 = vmatprep.subr.mxu0 0.0
  %80 = vmatpush1.msra.mxu0 0.0
  %81 = vmatprep.subr.mxu0 0.0
  %82 = vmatpush1.msra.mxu0 0.0
  %83 = vmatprep.subr.mxu0 0.0
  %84 = vmatpush1.msra.mxu0 0.0
  %85 = vmatprep.subr.mxu0 0.0
  %86 = vmatpush1.msra.mxu0 0.0
  %87 = vmatprep.subr.mxu0 0.0
  %88 = vmatpush1.msra.mxu0 %v47
  %89 = vmatprep.subr.mxu0 0.0
  %90 = vmatpush1.msra.mxu0 %v46
  %91 = vmatprep.subr.mxu0 0.0
  %92 = vmatpush1.msra.mxu0 %v45
  %93 = vmatprep.subr.mxu0 0.0
  %94 = vmatpush1.msra.mxu0 %v44
  %95 = vmatprep.subr.mxu0 0.0
  %96 = vmatpush1.msra.mxu0 %v43
  %97 = vmatprep.subr.mxu0 0.0
  %98 = vmatpush1.msra.mxu0 %v42
  %99 = vmatprep.subr.mxu0 0.0
  %100 = vmatpush2.msra.mxu0 0.0
  %101 = vmatprep.subr.mxu0 0.0
  %102 = vmatpush2.msra.mxu0 0.0
  %103 = vmatprep.subr.mxu0 0.0
  %104 = vmatpush2.msra.mxu0 0.0
  %105 = vmatprep.subr.mxu0 0.0
  %106 = vmatpush2.msra.mxu0 0.0
  %107 = vmatprep.subr.mxu0 0.0
  %108 = vmatpush2.msra.mxu0 0.0
  %109 = vmatprep.subr.mxu0 0.0
  %110 = vmatpush2.msra.mxu0 0.0
  %111 = vmatprep.subr.mxu0 0.0
  %112 = vmatpush2.msra.mxu0 0.0
  %113 = vmatprep.subr.mxu0 0.0
  %114 = vmatpush2.msra.mxu0 0.0
  %115 = vmatprep.subr.mxu0 0.0
  %116 = vmatpush2.msra.mxu0 0.0
  %117 = vmatprep.subr.mxu0 0.0
  %118 = vmatpush2.msra.mxu0 0.0
  %119 = vmatprep.subr.mxu0 0.0
  %120 = vmatpush2.msra.mxu0 0.0
  %121 = vmatprep.subr.mxu0 0.0
  %122 = vmatpush2.msra.mxu0 0.0
  %123 = vmatprep.subr.mxu0 0.0
  %124 = vmatpush2.msra.mxu0 0.0
  %125 = vmatprep.subr.mxu0 0.0
  %126 = vmatpush2.msra.mxu0 0.0
  %127 = vmatprep.subr.mxu0 0.0
  %128 = vmatpush2.msra.mxu0 0.0
  %129 = vmatprep.subr.mxu0 0.0
  %130 = vmatpush2.msra.mxu0 0.0
  %131 = vmatprep.mubr.f32.mxu0 0.0
  %132 = vmatmul.mubr.f32.gmra.mxu0 %v62
  %v133 = vpop.f32.mrf.mxu0
  %v134 = vadd.f32 %v59, %v133
  %v135 = vpop.f32.mrf.mxu0
  %136 = vmatprep.mubr.f32.mxu0 0.0
  %137 = vmatmul.mubr.f32.gmra.mxu0 %v65
  %v138 = vpop.f32.mrf.mxu0
  %v139 = vadd.f32 %v59, %v138
  %v140 = vpop.f32.mrf.mxu0
  %141 = vdwg.mxu0
  %v144 = vcombine.high %v134, %v134
  %v146 = vunpack.c.l.s4 1983009808
  %v147 = vunpack.c.0.s8 %v146
  %v148 = vlaneseq
  %v149 = vshrl.u32 %v148, 7
  %v150 = vsub.s32 %v147, %v149
  %v151 = vrot.slane %v134, %v150
  %v153 = vunpack.c.l.s4 1983009808
  %v154 = vunpack.c.0.s8 %v153
  %v155 = vlaneseq
  %v156 = vshrl.u32 %v155, 7
  %v157 = vsub.s32 %v154, %v156
  %v158 = vrot.slane %v144, %v157
  %v159 = vcombine.high %v151, %v151
  %v160 = vcombine.high %v158, %v158
  %v162 = vunpack.c.l.s4 1983009808
  %v163 = vunpack.c.0.s8 %v162
  %v164 = vlaneseq
  %v165 = vshrl.u32 %v164, 7
  %v166 = vsub.s32 %v163, %v165
  %v167 = vrot.slane %v139, %v166
  %v168 = vcombine.high %v167, %v167
  %v175 = vlaneseq
  %v176 = vshrl.u32 %v175, 7
  %v177 = vsub.s32 0, %v176
  %v178 = vrot.slane %v49, %v177
  %v179 = vlaneseq
  %v180 = vshrl.u32 %v179, 7
  %v181 = vsub.s32 0, %v180
  %v182 = vrot.slane %v50, %v181
  %v183 = vld [vmem:[%s2] sm:$0xff]
  %v184 = vld [vmem:[%s2 + $0x8] sm:$0xff]
  %v185 = vld [vmem:[%s2 + $0x10] sm:$0xff]
  %v186 = vld [vmem:[%s2 + $0x18] sm:$0xff]
  %v187 = vld [vmem:[%s2 + $0x20] sm:$0xff]
  %v188 = vld [vmem:[%s2 + $0x28] sm:$0xff]
  %v189 = vld [vmem:[%s2 + $0x30] sm:$0xff]
  %v190 = vld [vmem:[%s2 + $0x38] sm:$0xff]
  %v191 = vld [vmem:[%s2 + $0x40] sm:$0xff]
  %v192 = vld [vmem:[%s2 + $0x48] sm:$0xff]
  %v193 = vld [vmem:[%s2 + $0x50] sm:$0xff]
  %v194 = vld [vmem:[%s2 + $0x58] sm:$0xff]
  %v195 = vld [vmem:[%s2 + $0x60] sm:$0xff]
  %v196 = vld [vmem:[%s2 + $0x68] sm:$0xff]
  %v197 = vld [vmem:[%s2 + $0x70] sm:$0xff]
  %v198 = vld [vmem:[%s2 + $0x78] sm:$0xff]
  %v199 = vld [vmem:[%s2 + $0x80] sm:$0xff]
  %v200 = vld [vmem:[%s2 + $0x88] sm:$0xff]
  %v201 = vld [vmem:[%s2 + $0x90] sm:$0xff]
  %v202 = vld [vmem:[%s2 + $0x98] sm:$0xff]
  %v203 = vld [vmem:[%s2 + $0xa0] sm:$0xff]
  %v204 = vld [vmem:[%s2 + $0xa8] sm:$0xff]
  %v205 = vld [vmem:[%s2 + $0xb0] sm:$0xff]
  %v206 = vld [vmem:[%s2 + $0xb8] sm:$0xff]
  %v207 = vld [vmem:[%s2 + $0xc0] sm:$0xff]
  %v208 = vld [vmem:[%s2 + $0xc8] sm:$0xff]
  %v209 = vld [vmem:[%s2 + $0xd0] sm:$0xff]
  %v210 = vld [vmem:[%s2 + $0xd8] sm:$0xff]
  %v211 = vld [vmem:[%s2 + $0xe0] sm:$0xff]
  %v212 = vld [vmem:[%s2 + $0xe8] sm:$0xff]
  %v213 = vld [vmem:[%s2 + $0xf0] sm:$0xff]
  %v214 = vld [vmem:[%s2 + $0xf8] sm:$0xff]
  %v215 = vld [vmem:[%s2 + $0x100] sm:$0xff]
  %v216 = vld [vmem:[%s2 + $0x108] sm:$0xff]
  %v217 = vld [vmem:[%s2 + $0x110] sm:$0xff]
  %v218 = vld [vmem:[%s2 + $0x118] sm:$0xff]
  %v219 = vld [vmem:[%s3] sm:$0x3]
  %s220 = scalar_lea.vmem %s3, 2
  %v221 = vld [vmem:[%s220] sm:$0x3]
  %s222 = scalar_lea.vmem %s3, 4
  %v223 = vld [vmem:[%s222] sm:$0x3]
  %v224 = vld [vmem:[%s4] sm:$0x3]
  %s225 = scalar_lea.vmem %s4, 2
  %v226 = vld [vmem:[%s225] sm:$0x3]
  %s227 = scalar_lea.vmem %s4, 4
  %v228 = vld [vmem:[%s227] sm:$0x3]
  %230 = vrot.lane.b32.xlu0 %v221, 32
  %v231 = vpop.permute.xlu0 %230
  %234 = vrot.lane.b32.xlu0 %v223, 64
  %v235 = vpop.permute.xlu0 %234
  %vm237 = vcmask 261120
  %v238 = vsel %vm237, %v219, %v231
  %vm239 = vcmask 523264
  %v240 = vsel %vm239, %v238, %v235
  %vm241 = vcmask 785408
  %v243 = vsel %vm241, %v240, 0
  %245 = vmatprep.subr.mxu0 0.0
  %246 = vmatpush1.msra.mxu0 0.0
  %247 = vmatprep.subr.mxu0 0.0
  %248 = vmatpush1.msra.mxu0 0.0
  %249 = vmatprep.subr.mxu0 0.0
  %250 = vmatpush1.msra.mxu0 0.0
  %251 = vmatprep.subr.mxu0 0.0
  %252 = vmatpush1.msra.mxu0 0.0
  %253 = vmatprep.subr.mxu0 %v217
  %254 = vmatpush1.msra.mxu0 %v216
  %255 = vmatprep.subr.mxu0 %v214
  %256 = vmatpush1.msra.mxu0 %v213
  %257 = vmatprep.subr.mxu0 %v211
  %258 = vmatpush1.msra.mxu0 %v210
  %259 = vmatprep.subr.mxu0 %v208
  %260 = vmatpush1.msra.mxu0 %v207
  %261 = vmatprep.subr.mxu0 %v205
  %262 = vmatpush1.msra.mxu0 %v204
  %263 = vmatprep.subr.mxu0 %v202
  %264 = vmatpush1.msra.mxu0 %v201
  %265 = vmatprep.subr.mxu0 %v199
  %266 = vmatpush1.msra.mxu0 %v198
  %267 = vmatprep.subr.mxu0 %v196
  %268 = vmatpush1.msra.mxu0 %v195
  %269 = vmatprep.subr.mxu0 %v193
  %270 = vmatpush1.msra.mxu0 %v192
  %271 = vmatprep.subr.mxu0 %v190
  %272 = vmatpush1.msra.mxu0 %v189
  %273 = vmatprep.subr.mxu0 %v187
  %274 = vmatpush1.msra.mxu0 %v186
  %275 = vmatprep.subr.mxu0 %v184
  %276 = vmatpush1.msra.mxu0 %v183
  %277 = vmatprep.subr.mxu0 0.0
  %278 = vmatpush2.msra.mxu0 0.0
  %279 = vmatprep.subr.mxu0 0.0
  %280 = vmatpush2.msra.mxu0 0.0
  %281 = vmatprep.subr.mxu0 0.0
  %282 = vmatpush2.msra.mxu0 0.0
  %283 = vmatprep.subr.mxu0 0.0
  %284 = vmatpush2.msra.mxu0 0.0
  %285 = vmatprep.subr.mxu0 0.0
  %286 = vmatpush2.msra.mxu0 0.0
  %287 = vmatprep.subr.mxu0 0.0
  %288 = vmatpush2.msra.mxu0 0.0
  %289 = vmatprep.subr.mxu0 0.0
  %290 = vmatpush2.msra.mxu0 0.0
  %291 = vmatprep.subr.mxu0 0.0
  %292 = vmatpush2.msra.mxu0 0.0
  %293 = vmatprep.subr.mxu0 0.0
  %294 = vmatpush2.msra.mxu0 0.0
  %295 = vmatprep.subr.mxu0 0.0
  %296 = vmatpush2.msra.mxu0 0.0
  %297 = vmatprep.subr.mxu0 0.0
  %298 = vmatpush2.msra.mxu0 0.0
  %299 = vmatprep.subr.mxu0 0.0
  %300 = vmatpush2.msra.mxu0 0.0
  %301 = vmatprep.subr.mxu0 0.0
  %302 = vmatpush2.msra.mxu0 0.0
  %303 = vmatprep.subr.mxu0 0.0
  %304 = vmatpush2.msra.mxu0 0.0
  %305 = vmatprep.subr.mxu0 0.0
  %306 = vmatpush2.msra.mxu0 0.0
  %307 = vmatprep.subr.mxu0 0.0
  %308 = vmatpush2.msra.mxu0 0.0
  %309 = vmatprep.mubr.f32.mxu0 0.0
  %310 = vmatmul.mubr.f32.gmra.mxu0 %v243
  %v311 = vpop.f32.mrf.mxu0
  %v312 = vadd.f32 %v151, %v311
  %v313 = vpop.f32.mrf.mxu0
  %314 = vdwg.mxu0
  %v315 = vxor.u32 %v312, 2147483648
  %v316 = vmul.f32 %v315, 1.442695
  %v317 = vpow.pop %v316
  %v318 = vadd.f32 %v317, 1.0
  %v319 = vrcp.pop %v318
  %v320 = vmul.f32 1.0, %v319
  %v321 = vtanh.pop %v312
  %323 = vrot.lane.b32.xlu0 %v224, 32
  %v324 = vpop.permute.xlu0 %323
  %v326 = vmul.f32 %v320, %v324
  %328 = vrot.lane.b32.xlu0 %v321, 64
  %v329 = vpop.permute.xlu0 %328
  %v331 = vmul.f32 %v320, %v329
  %333 = vrot.lane.b32.xlu0 %v331, 32
  %v334 = vpop.permute.xlu0 %333
  %v336 = vadd.f32 %v326, %v334
  %v337 = vtanh.pop %v336
  %339 = vrot.lane.b32.xlu0 %v337, 64
  %v340 = vpop.permute.xlu0 %339
  %v342 = vmul.f32 %v320, %v340
  %344 = vrot.lane.b32.xlu0 %v342, 32
  %v345 = vpop.permute.xlu0 %344
  %v347 = vsel %vm237, %v345, %v231
  %v348 = vsel %vm239, %v347, %v235
  %v350 = vsel %vm241, %v348, 0
  %352 = vmatprep.subr.mxu0 0.0
  %353 = vmatpush1.msra.mxu0 0.0
  %354 = vmatprep.subr.mxu0 0.0
  %355 = vmatpush1.msra.mxu0 0.0
  %356 = vmatprep.subr.mxu0 0.0
  %357 = vmatpush1.msra.mxu0 0.0
  %358 = vmatprep.subr.mxu0 0.0
  %359 = vmatpush1.msra.mxu0 0.0
  %360 = vmatprep.subr.mxu0 %v217
  %361 = vmatpush1.msra.mxu0 %v216
  %362 = vmatprep.subr.mxu0 %v214
  %363 = vmatpush1.msra.mxu0 %v213
  %364 = vmatprep.subr.mxu0 %v211
  %365 = vmatpush1.msra.mxu0 %v210
  %366 = vmatprep.subr.mxu0 %v208
  %367 = vmatpush1.msra.mxu0 %v207
  %368 = vmatprep.subr.mxu0 %v205
  %369 = vmatpush1.msra.mxu0 %v204
  %370 = vmatprep.subr.mxu0 %v202
  %371 = vmatpush1.msra.mxu0 %v201
  %372 = vmatprep.subr.mxu0 %v199
  %373 = vmatpush1.msra.mxu0 %v198
  %374 = vmatprep.subr.mxu0 %v196
  %375 = vmatpush1.msra.mxu0 %v195
  %376 = vmatprep.subr.mxu0 %v193
  %377 = vmatpush1.msra.mxu0 %v192
  %378 = vmatprep.subr.mxu0 %v190
  %379 = vmatpush1.msra.mxu0 %v189
  %380 = vmatprep.subr.mxu0 %v187
  %381 = vmatpush1.msra.mxu0 %v186
  %382 = vmatprep.subr.mxu0 %v184
  %383 = vmatpush1.msra.mxu0 %v183
  %384 = vmatprep.subr.mxu0 0.0
  %385 = vmatpush2.msra.mxu0 0.0
  %386 = vmatprep.subr.mxu0 0.0
  %387 = vmatpush2.msra.mxu0 0.0
  %388 = vmatprep.subr.mxu0 0.0
  %389 = vmatpush2.msra.mxu0 0.0
  %390 = vmatprep.subr.mxu0 0.0
  %391 = vmatpush2.msra.mxu0 0.0
  %392 = vmatprep.subr.mxu0 0.0
  %393 = vmatpush2.msra.mxu0 0.0
  %394 = vmatprep.subr.mxu0 0.0
  %395 = vmatpush2.msra.mxu0 0.0
  %396 = vmatprep.subr.mxu0 0.0
  %397 = vmatpush2.msra.mxu0 0.0
  %398 = vmatprep.subr.mxu0 0.0
  %399 = vmatpush2.msra.mxu0 0.0
  %400 = vmatprep.subr.mxu0 0.0
  %401 = vmatpush2.msra.mxu0 0.0
  %402 = vmatprep.subr.mxu0 0.0
  %403 = vmatpush2.msra.mxu0 0.0
  %404 = vmatprep.subr.mxu0 0.0
  %405 = vmatpush2.msra.mxu0 0.0
  %406 = vmatprep.subr.mxu0 0.0
  %407 = vmatpush2.msra.mxu0 0.0
  %408 = vmatprep.subr.mxu0 0.0
  %409 = vmatpush2.msra.mxu0 0.0
  %410 = vmatprep.subr.mxu0 0.0
  %411 = vmatpush2.msra.mxu0 0.0
  %412 = vmatprep.subr.mxu0 0.0
  %413 = vmatpush2.msra.mxu0 0.0
  %414 = vmatprep.subr.mxu0 0.0
  %415 = vmatpush2.msra.mxu0 0.0
  %416 = vmatprep.mubr.f32.mxu0 0.0
  %417 = vmatmul.mubr.f32.gmra.mxu0 %v350
  %v418 = vpop.f32.mrf.mxu0
  %v419 = vadd.f32 %v159, %v418
  %v420 = vpop.f32.mrf.mxu0
  %v421 = vadd.f32 %v178, %v420
  %422 = vdwg.mxu0
  %v423 = vxor.u32 %v419, 2147483648
  %v424 = vxor.u32 %v421, 2147483648
  %v425 = vmul.f32 %v423, 1.442695
  %v426 = vpow.pop %v425
  %v427 = vmul.f32 %v424, 1.442695
  %v428 = vpow.pop %v427
  %v429 = vadd.f32 %v426, 1.0
  %v430 = vadd.f32 %v428, 1.0
  %v431 = vrcp.pop %v429
  %v432 = vmul.f32 1.0, %v431
  %v433 = vrcp.pop %v430
  %v434 = vmul.f32 1.0, %v433
  %v435 = vtanh.pop %v419
  %v436 = vtanh.pop %v421
  %v437 = vmul.f32 %v432, %v336
  %439 = vrot.lane.b32.xlu0 %v435, 64
  %v440 = vpop.permute.xlu0 %439
  %v442 = vmul.f32 %v432, %v440
  %444 = vrot.lane.b32.xlu0 %v442, 32
  %v445 = vpop.permute.xlu0 %444
  %v447 = vadd.f32 %v437, %v445
  %v448 = vtanh.pop %v447
  %450 = vrot.lane.b32.xlu0 %v448, 64
  %v451 = vpop.permute.xlu0 %450
  %v453 = vmul.f32 %v432, %v451
  %455 = vrot.lane.b32.xlu0 %v226, 32
  %v456 = vpop.permute.xlu0 %455
  %v458 = vmul.f32 %v434, %v456
  %460 = vrot.lane.b32.xlu0 %v436, 64
  %v461 = vpop.permute.xlu0 %460
  %v463 = vmul.f32 %v434, %v461
  %465 = vrot.lane.b32.xlu0 %v463, 32
  %v466 = vpop.permute.xlu0 %465
  %v468 = vadd.f32 %v458, %v466
  %v469 = vtanh.pop %v468
  %471 = vrot.lane.b32.xlu0 %v469, 64
  %v472 = vpop.permute.xlu0 %471
  %v474 = vmul.f32 %v434, %v472
  %476 = vrot.lane.b32.xlu0 %v453, 32
  %v477 = vpop.permute.xlu0 %476
  %480 = vrot.lane.b32.xlu0 %v474, 64
  %v481 = vpop.permute.xlu0 %480
  %v483 = vsel %vm237, %v477, %v481
  %v484 = vsel %vm239, %v483, %v235
  %v486 = vsel %vm241, %v484, 0
  %488 = vmatprep.subr.mxu0 0.0
  %489 = vmatpush1.msra.mxu0 0.0
  %490 = vmatprep.subr.mxu0 0.0
  %491 = vmatpush1.msra.mxu0 0.0
  %492 = vmatprep.subr.mxu0 0.0
  %493 = vmatpush1.msra.mxu0 0.0
  %494 = vmatprep.subr.mxu0 0.0
  %495 = vmatpush1.msra.mxu0 0.0
  %496 = vmatprep.subr.mxu0 %v217
  %497 = vmatpush1.msra.mxu0 %v216
  %498 = vmatprep.subr.mxu0 %v214
  %499 = vmatpush1.msra.mxu0 %v213
  %500 = vmatprep.subr.mxu0 %v211
  %501 = vmatpush1.msra.mxu0 %v210
  %502 = vmatprep.subr.mxu0 %v208
  %503 = vmatpush1.msra.mxu0 %v207
  %504 = vmatprep.subr.mxu0 %v205
  %505 = vmatpush1.msra.mxu0 %v204
  %506 = vmatprep.subr.mxu0 %v202
  %507 = vmatpush1.msra.mxu0 %v201
  %508 = vmatprep.subr.mxu0 %v199
  %509 = vmatpush1.msra.mxu0 %v198
  %510 = vmatprep.subr.mxu0 %v196
  %511 = vmatpush1.msra.mxu0 %v195
  %512 = vmatprep.subr.mxu0 %v193
  %513 = vmatpush1.msra.mxu0 %v192
  %514 = vmatprep.subr.mxu0 %v190
  %515 = vmatpush1.msra.mxu0 %v189
  %516 = vmatprep.subr.mxu0 %v187
  %517 = vmatpush1.msra.mxu0 %v186
  %518 = vmatprep.subr.mxu0 %v184
  %519 = vmatpush1.msra.mxu0 %v183
  %520 = vmatprep.subr.mxu0 0.0
  %521 = vmatpush2.msra.mxu0 0.0
  %522 = vmatprep.subr.mxu0 0.0
  %523 = vmatpush2.msra.mxu0 0.0
  %524 = vmatprep.subr.mxu0 0.0
  %525 = vmatpush2.msra.mxu0 0.0
  %526 = vmatprep.subr.mxu0 0.0
  %527 = vmatpush2.msra.mxu0 0.0
  %528 = vmatprep.subr.mxu0 0.0
  %529 = vmatpush2.msra.mxu0 0.0
  %530 = vmatprep.subr.mxu0 0.0
  %531 = vmatpush2.msra.mxu0 0.0
  %532 = vmatprep.subr.mxu0 0.0
  %533 = vmatpush2.msra.mxu0 0.0
  %534 = vmatprep.subr.mxu0 0.0
  %535 = vmatpush2.msra.mxu0 0.0
  %536 = vmatprep.subr.mxu0 0.0
  %537 = vmatpush2.msra.mxu0 0.0
  %538 = vmatprep.subr.mxu0 0.0
  %539 = vmatpush2.msra.mxu0 0.0
  %540 = vmatprep.subr.mxu0 0.0
  %541 = vmatpush2.msra.mxu0 0.0
  %542 = vmatprep.subr.mxu0 0.0
  %543 = vmatpush2.msra.mxu0 0.0
  %544 = vmatprep.subr.mxu0 0.0
  %545 = vmatpush2.msra.mxu0 0.0
  %546 = vmatprep.subr.mxu0 0.0
  %547 = vmatpush2.msra.mxu0 0.0
  %548 = vmatprep.subr.mxu0 0.0
  %549 = vmatpush2.msra.mxu0 0.0
  %550 = vmatprep.subr.mxu0 0.0
  %551 = vmatpush2.msra.mxu0 0.0
  %552 = vmatprep.mubr.f32.mxu0 0.0
  %553 = vmatmul.mubr.f32.gmra.mxu0 %v486
  %v554 = vpop.f32.mrf.mxu0
  %v555 = vadd.f32 %v158, %v554
  %v556 = vpop.f32.mrf.mxu0
  %v557 = vadd.f32 %v178, %v556
  %558 = vdwg.mxu0
  %559 = vmatprep.subr.mxu0 0.0
  %560 = vmatpush1.msra.mxu0 0.0
  %561 = vmatprep.subr.mxu0 0.0
  %562 = vmatpush1.msra.mxu0 0.0
  %563 = vmatprep.subr.mxu0 0.0
  %564 = vmatpush1.msra.mxu0 0.0
  %565 = vmatprep.subr.mxu0 0.0
  %566 = vmatpush1.msra.mxu0 0.0
  %567 = vmatprep.subr.mxu0 0.0
  %568 = vmatpush1.msra.mxu0 %v218
  %569 = vmatprep.subr.mxu0 0.0
  %570 = vmatpush1.msra.mxu0 %v215
  %571 = vmatprep.subr.mxu0 0.0
  %572 = vmatpush1.msra.mxu0 %v212
  %573 = vmatprep.subr.mxu0 0.0
  %574 = vmatpush1.msra.mxu0 %v209
  %575 = vmatprep.subr.mxu0 0.0
  %576 = vmatpush1.msra.mxu0 %v206
  %577 = vmatprep.subr.mxu0 0.0
  %578 = vmatpush1.msra.mxu0 %v203
  %579 = vmatprep.subr.mxu0 0.0
  %580 = vmatpush1.msra.mxu0 %v200
  %581 = vmatprep.subr.mxu0 0.0
  %582 = vmatpush1.msra.mxu0 %v197
  %583 = vmatprep.subr.mxu0 0.0
  %584 = vmatpush1.msra.mxu0 %v194
  %585 = vmatprep.subr.mxu0 0.0
  %586 = vmatpush1.msra.mxu0 %v191
  %587 = vmatprep.subr.mxu0 0.0
  %588 = vmatpush1.msra.mxu0 %v188
  %589 = vmatprep.subr.mxu0 0.0
  %590 = vmatpush1.msra.mxu0 %v185
  %591 = vmatprep.subr.mxu0 0.0
  %592 = vmatpush2.msra.mxu0 0.0
  %593 = vmatprep.subr.mxu0 0.0
  %594 = vmatpush2.msra.mxu0 0.0
  %595 = vmatprep.subr.mxu0 0.0
  %596 = vmatpush2.msra.mxu0 0.0
  %597 = vmatprep.subr.mxu0 0.0
  %598 = vmatpush2.msra.mxu0 0.0
  %599 = vmatprep.subr.mxu0 0.0
  %600 = vmatpush2.msra.mxu0 0.0
  %601 = vmatprep.subr.mxu0 0.0
  %602 = vmatpush2.msra.mxu0 0.0
  %603 = vmatprep.subr.mxu0 0.0
  %604 = vmatpush2.msra.mxu0 0.0
  %605 = vmatprep.subr.mxu0 0.0
  %606 = vmatpush2.msra.mxu0 0.0
  %607 = vmatprep.subr.mxu0 0.0
  %608 = vmatpush2.msra.mxu0 0.0
  %609 = vmatprep.subr.mxu0 0.0
  %610 = vmatpush2.msra.mxu0 0.0
  %611 = vmatprep.subr.mxu0 0.0
  %612 = vmatpush2.msra.mxu0 0.0
  %613 = vmatprep.subr.mxu0 0.0
  %614 = vmatpush2.msra.mxu0 0.0
  %615 = vmatprep.subr.mxu0 0.0
  %616 = vmatpush2.msra.mxu0 0.0
  %617 = vmatprep.subr.mxu0 0.0
  %618 = vmatpush2.msra.mxu0 0.0
  %619 = vmatprep.subr.mxu0 0.0
  %620 = vmatpush2.msra.mxu0 0.0
  %621 = vmatprep.subr.mxu0 0.0
  %622 = vmatpush2.msra.mxu0 0.0
  %623 = vmatprep.mubr.f32.mxu0 0.0
  %624 = vmatmul.mubr.f32.gmra.mxu0 %v486
  %v625 = vpop.f32.mrf.mxu0
  %v626 = vadd.f32 %v182, %v625
  %v627 = vpop.f32.mrf.mxu0
  %628 = vdwg.mxu0
  %v629 = vxor.u32 %v555, 2147483648
  %v630 = vxor.u32 %v557, 2147483648
  %v631 = vxor.u32 %v626, 2147483648
  %v632 = vmul.f32 %v629, 1.442695
  %v633 = vpow.pop %v632
  %v634 = vmul.f32 %v630, 1.442695
  %v635 = vpow.pop %v634
  %v636 = vmul.f32 %v631, 1.442695
  %v637 = vpow.pop %v636
  %v638 = vadd.f32 %v633, 1.0
  %v639 = vadd.f32 %v635, 1.0
  %v640 = vadd.f32 %v637, 1.0
  %v641 = vrcp.pop %v638
  %v642 = vmul.f32 1.0, %v641
  %v643 = vrcp.pop %v639
  %v644 = vmul.f32 1.0, %v643
  %v645 = vrcp.pop %v640
  %v646 = vmul.f32 1.0, %v645
  %v647 = vtanh.pop %v555
  %v648 = vtanh.pop %v557
  %v649 = vtanh.pop %v626
  %v650 = vmul.f32 %v642, %v447
  %652 = vrot.lane.b32.xlu0 %v647, 64
  %v653 = vpop.permute.xlu0 %652
  %v655 = vmul.f32 %v642, %v653
  %657 = vrot.lane.b32.xlu0 %v655, 32
  %v658 = vpop.permute.xlu0 %657
  %v660 = vadd.f32 %v650, %v658
  %v661 = vtanh.pop %v660
  %663 = vrot.lane.b32.xlu0 %v661, 64
  %v664 = vpop.permute.xlu0 %663
  %v666 = vmul.f32 %v642, %v664
  %v667 = vmul.f32 %v644, %v468
  %669 = vrot.lane.b32.xlu0 %v648, 64
  %v670 = vpop.permute.xlu0 %669
  %v672 = vmul.f32 %v644, %v670
  %674 = vrot.lane.b32.xlu0 %v672, 32
  %v675 = vpop.permute.xlu0 %674
  %v677 = vadd.f32 %v667, %v675
  %v678 = vtanh.pop %v677
  %680 = vrot.lane.b32.xlu0 %v678, 64
  %v681 = vpop.permute.xlu0 %680
  %v683 = vmul.f32 %v644, %v681
  %685 = vrot.lane.b32.xlu0 %v228, 32
  %v686 = vpop.permute.xlu0 %685
  %v688 = vmul.f32 %v646, %v686
  %690 = vrot.lane.b32.xlu0 %v649, 64
  %v691 = vpop.permute.xlu0 %690
  %v693 = vmul.f32 %v646, %v691
  %695 = vrot.lane.b32.xlu0 %v693, 32
  %v696 = vpop.permute.xlu0 %695
  %v698 = vadd.f32 %v688, %v696
  %v699 = vtanh.pop %v698
  %701 = vrot.lane.b32.xlu0 %v699, 64
  %v702 = vpop.permute.xlu0 %701
  %v704 = vmul.f32 %v646, %v702
  %706 = vrot.lane.b32.xlu0 %v666, 32
  %v707 = vpop.permute.xlu0 %706
  %710 = vrot.lane.b32.xlu0 %v683, 64
  %v711 = vpop.permute.xlu0 %710
  %714 = vrot.lane.b32.xlu0 %v704, 96
  %v715 = vpop.permute.xlu0 %714
  %v717 = vsel %vm237, %v707, %v711
  %v718 = vsel %vm239, %v717, %v715
  %v720 = vsel %vm241, %v718, 0
  %722 = vmatprep.subr.mxu0 0.0
  %723 = vmatpush1.msra.mxu0 0.0
  %724 = vmatprep.subr.mxu0 0.0
  %725 = vmatpush1.msra.mxu0 0.0
  %726 = vmatprep.subr.mxu0 0.0
  %727 = vmatpush1.msra.mxu0 0.0
  %728 = vmatprep.subr.mxu0 0.0
  %729 = vmatpush1.msra.mxu0 0.0
  %730 = vmatprep.subr.mxu0 %v217
  %731 = vmatpush1.msra.mxu0 %v216
  %732 = vmatprep.subr.mxu0 %v214
  %733 = vmatpush1.msra.mxu0 %v213
  %734 = vmatprep.subr.mxu0 %v211
  %735 = vmatpush1.msra.mxu0 %v210
  %736 = vmatprep.subr.mxu0 %v208
  %737 = vmatpush1.msra.mxu0 %v207
  %738 = vmatprep.subr.mxu0 %v205
  %739 = vmatpush1.msra.mxu0 %v204
  %740 = vmatprep.subr.mxu0 %v202
  %741 = vmatpush1.msra.mxu0 %v201
  %742 = vmatprep.subr.mxu0 %v199
  %743 = vmatpush1.msra.mxu0 %v198
  %744 = vmatprep.subr.mxu0 %v196
  %745 = vmatpush1.msra.mxu0 %v195
  %746 = vmatprep.subr.mxu0 %v193
  %747 = vmatpush1.msra.mxu0 %v192
  %748 = vmatprep.subr.mxu0 %v190
  %749 = vmatpush1.msra.mxu0 %v189
  %750 = vmatprep.subr.mxu0 %v187
  %751 = vmatpush1.msra.mxu0 %v186
  %752 = vmatprep.subr.mxu0 %v184
  %753 = vmatpush1.msra.mxu0 %v183
  %754 = vmatprep.subr.mxu0 0.0
  %755 = vmatpush2.msra.mxu0 0.0
  %756 = vmatprep.subr.mxu0 0.0
  %757 = vmatpush2.msra.mxu0 0.0
  %758 = vmatprep.subr.mxu0 0.0
  %759 = vmatpush2.msra.mxu0 0.0
  %760 = vmatprep.subr.mxu0 0.0
  %761 = vmatpush2.msra.mxu0 0.0
  %762 = vmatprep.subr.mxu0 0.0
  %763 = vmatpush2.msra.mxu0 0.0
  %764 = vmatprep.subr.mxu0 0.0
  %765 = vmatpush2.msra.mxu0 0.0
  %766 = vmatprep.subr.mxu0 0.0
  %767 = vmatpush2.msra.mxu0 0.0
  %768 = vmatprep.subr.mxu0 0.0
  %769 = vmatpush2.msra.mxu0 0.0
  %770 = vmatprep.subr.mxu0 0.0
  %771 = vmatpush2.msra.mxu0 0.0
  %772 = vmatprep.subr.mxu0 0.0
  %773 = vmatpush2.msra.mxu0 0.0
  %774 = vmatprep.subr.mxu0 0.0
  %775 = vmatpush2.msra.mxu0 0.0
  %776 = vmatprep.subr.mxu0 0.0
  %777 = vmatpush2.msra.mxu0 0.0
  %778 = vmatprep.subr.mxu0 0.0
  %779 = vmatpush2.msra.mxu0 0.0
  %780 = vmatprep.subr.mxu0 0.0
  %781 = vmatpush2.msra.mxu0 0.0
  %782 = vmatprep.subr.mxu0 0.0
  %783 = vmatpush2.msra.mxu0 0.0
  %784 = vmatprep.subr.mxu0 0.0
  %785 = vmatpush2.msra.mxu0 0.0
  %786 = vmatprep.mubr.f32.mxu0 0.0
  %787 = vmatmul.mubr.f32.gmra.mxu0 %v720
  %v788 = vpop.f32.mrf.mxu0
  %v789 = vadd.f32 %v160, %v788
  %v790 = vpop.f32.mrf.mxu0
  %v791 = vadd.f32 %v178, %v790
  %792 = vdwg.mxu0
  %793 = vmatprep.subr.mxu0 0.0
  %794 = vmatpush1.msra.mxu0 0.0
  %795 = vmatprep.subr.mxu0 0.0
  %796 = vmatpush1.msra.mxu0 0.0
  %797 = vmatprep.subr.mxu0 0.0
  %798 = vmatpush1.msra.mxu0 0.0
  %799 = vmatprep.subr.mxu0 0.0
  %800 = vmatpush1.msra.mxu0 0.0
  %801 = vmatprep.subr.mxu0 0.0
  %802 = vmatpush1.msra.mxu0 %v218
  %803 = vmatprep.subr.mxu0 0.0
  %804 = vmatpush1.msra.mxu0 %v215
  %805 = vmatprep.subr.mxu0 0.0
  %806 = vmatpush1.msra.mxu0 %v212
  %807 = vmatprep.subr.mxu0 0.0
  %808 = vmatpush1.msra.mxu0 %v209
  %809 = vmatprep.subr.mxu0 0.0
  %810 = vmatpush1.msra.mxu0 %v206
  %811 = vmatprep.subr.mxu0 0.0
  %812 = vmatpush1.msra.mxu0 %v203
  %813 = vmatprep.subr.mxu0 0.0
  %814 = vmatpush1.msra.mxu0 %v200
  %815 = vmatprep.subr.mxu0 0.0
  %816 = vmatpush1.msra.mxu0 %v197
  %817 = vmatprep.subr.mxu0 0.0
  %818 = vmatpush1.msra.mxu0 %v194
  %819 = vmatprep.subr.mxu0 0.0
  %820 = vmatpush1.msra.mxu0 %v191
  %821 = vmatprep.subr.mxu0 0.0
  %822 = vmatpush1.msra.mxu0 %v188
  %823 = vmatprep.subr.mxu0 0.0
  %824 = vmatpush1.msra.mxu0 %v185
  %825 = vmatprep.subr.mxu0 0.0
  %826 = vmatpush2.msra.mxu0 0.0
  %827 = vmatprep.subr.mxu0 0.0
  %828 = vmatpush2.msra.mxu0 0.0
  %829 = vmatprep.subr.mxu0 0.0
  %830 = vmatpush2.msra.mxu0 0.0
  %831 = vmatprep.subr.mxu0 0.0
  %832 = vmatpush2.msra.mxu0 0.0
  %833 = vmatprep.subr.mxu0 0.0
  %834 = vmatpush2.msra.mxu0 0.0
  %835 = vmatprep.subr.mxu0 0.0
  %836 = vmatpush2.msra.mxu0 0.0
  %837 = vmatprep.subr.mxu0 0.0
  %838 = vmatpush2.msra.mxu0 0.0
  %839 = vmatprep.subr.mxu0 0.0
  %840 = vmatpush2.msra.mxu0 0.0
  %841 = vmatprep.subr.mxu0 0.0
  %842 = vmatpush2.msra.mxu0 0.0
  %843 = vmatprep.subr.mxu0 0.0
  %844 = vmatpush2.msra.mxu0 0.0
  %845 = vmatprep.subr.mxu0 0.0
  %846 = vmatpush2.msra.mxu0 0.0
  %847 = vmatprep.subr.mxu0 0.0
  %848 = vmatpush2.msra.mxu0 0.0
  %849 = vmatprep.subr.mxu0 0.0
  %850 = vmatpush2.msra.mxu0 0.0
  %851 = vmatprep.subr.mxu0 0.0
  %852 = vmatpush2.msra.mxu0 0.0
  %853 = vmatprep.subr.mxu0 0.0
  %854 = vmatpush2.msra.mxu0 0.0
  %855 = vmatprep.subr.mxu0 0.0
  %856 = vmatpush2.msra.mxu0 0.0
  %857 = vmatprep.mubr.f32.mxu0 0.0
  %858 = vmatmul.mubr.f32.gmra.mxu0 %v720
  %v859 = vpop.f32.mrf.mxu0
  %v860 = vadd.f32 %v182, %v859
  %v861 = vpop.f32.mrf.mxu0
  %862 = vdwg.mxu0
  %v863 = vxor.u32 %v789, 2147483648
  %v864 = vxor.u32 %v791, 2147483648
  %v865 = vxor.u32 %v860, 2147483648
  %v866 = vmul.f32 %v863, 1.442695
  %v867 = vpow.pop %v866
  %v868 = vmul.f32 %v864, 1.442695
  %v869 = vpow.pop %v868
  %v870 = vmul.f32 %v865, 1.442695
  %v871 = vpow.pop %v870
  %v872 = vadd.f32 %v867, 1.0
  %v873 = vadd.f32 %v869, 1.0
  %v874 = vadd.f32 %v871, 1.0
  %v875 = vrcp.pop %v872
  %v876 = vmul.f32 1.0, %v875
  %v877 = vrcp.pop %v873
  %v878 = vmul.f32 1.0, %v877
  %v879 = vrcp.pop %v874
  %v880 = vmul.f32 1.0, %v879
  %v881 = vtanh.pop %v789
  %v882 = vtanh.pop %v791
  %v883 = vtanh.pop %v860
  %v884 = vmul.f32 %v876, %v660
  %886 = vrot.lane.b32.xlu0 %v881, 64
  %v887 = vpop.permute.xlu0 %886
  %v889 = vmul.f32 %v876, %v887
  %891 = vrot.lane.b32.xlu0 %v889, 32
  %v892 = vpop.permute.xlu0 %891
  %v894 = vadd.f32 %v884, %v892
  %v895 = vtanh.pop %v894
  %897 = vrot.lane.b32.xlu0 %v895, 64
  %v898 = vpop.permute.xlu0 %897
  %v900 = vmul.f32 %v876, %v898
  %v901 = vmul.f32 %v878, %v677
  %903 = vrot.lane.b32.xlu0 %v882, 64
  %v904 = vpop.permute.xlu0 %903
  %v906 = vmul.f32 %v878, %v904
  %908 = vrot.lane.b32.xlu0 %v906, 32
  %v909 = vpop.permute.xlu0 %908
  %v911 = vadd.f32 %v901, %v909
  %v912 = vtanh.pop %v911
  %914 = vrot.lane.b32.xlu0 %v912, 64
  %v915 = vpop.permute.xlu0 %914
  %v917 = vmul.f32 %v878, %v915
  %v918 = vmul.f32 %v880, %v698
  %920 = vrot.lane.b32.xlu0 %v883, 64
  %v921 = vpop.permute.xlu0 %920
  %v923 = vmul.f32 %v880, %v921
  %925 = vrot.lane.b32.xlu0 %v923, 32
  %v926 = vpop.permute.xlu0 %925
  %v928 = vadd.f32 %v918, %v926
  %v929 = vtanh.pop %v928
  %931 = vrot.lane.b32.xlu0 %v929, 64
  %v932 = vpop.permute.xlu0 %931
  %v934 = vmul.f32 %v880, %v932
  %936 = vrot.lane.b32.xlu0 %v900, 32
  %v937 = vpop.permute.xlu0 %936
  %940 = vrot.lane.b32.xlu0 %v917, 64
  %v941 = vpop.permute.xlu0 %940
  %944 = vrot.lane.b32.xlu0 %v934, 96
  %v945 = vpop.permute.xlu0 %944
  %v947 = vsel %vm237, %v937, %v941
  %v948 = vsel %vm239, %v947, %v945
  %v950 = vsel %vm241, %v948, 0
  %952 = vmatprep.subr.mxu0 0.0
  %953 = vmatpush1.msra.mxu0 0.0
  %954 = vmatprep.subr.mxu0 0.0
  %955 = vmatpush1.msra.mxu0 0.0
  %956 = vmatprep.subr.mxu0 0.0
  %957 = vmatpush1.msra.mxu0 0.0
  %958 = vmatprep.subr.mxu0 0.0
  %959 = vmatpush1.msra.mxu0 0.0
  %960 = vmatprep.subr.mxu0 %v217
  %961 = vmatpush1.msra.mxu0 %v216
  %962 = vmatprep.subr.mxu0 %v214
  %963 = vmatpush1.msra.mxu0 %v213
  %964 = vmatprep.subr.mxu0 %v211
  %965 = vmatpush1.msra.mxu0 %v210
  %966 = vmatprep.subr.mxu0 %v208
  %967 = vmatpush1.msra.mxu0 %v207
  %968 = vmatprep.subr.mxu0 %v205
  %969 = vmatpush1.msra.mxu0 %v204
  %970 = vmatprep.subr.mxu0 %v202
  %971 = vmatpush1.msra.mxu0 %v201
  %972 = vmatprep.subr.mxu0 %v199
  %973 = vmatpush1.msra.mxu0 %v198
  %974 = vmatprep.subr.mxu0 %v196
  %975 = vmatpush1.msra.mxu0 %v195
  %976 = vmatprep.subr.mxu0 %v193
  %977 = vmatpush1.msra.mxu0 %v192
  %978 = vmatprep.subr.mxu0 %v190
  %979 = vmatpush1.msra.mxu0 %v189
  %980 = vmatprep.subr.mxu0 %v187
  %981 = vmatpush1.msra.mxu0 %v186
  %982 = vmatprep.subr.mxu0 %v184
  %983 = vmatpush1.msra.mxu0 %v183
  %984 = vmatprep.subr.mxu0 0.0
  %985 = vmatpush2.msra.mxu0 0.0
  %986 = vmatprep.subr.mxu0 0.0
  %987 = vmatpush2.msra.mxu0 0.0
  %988 = vmatprep.subr.mxu0 0.0
  %989 = vmatpush2.msra.mxu0 0.0
  %990 = vmatprep.subr.mxu0 0.0
  %991 = vmatpush2.msra.mxu0 0.0
  %992 = vmatprep.subr.mxu0 0.0
  %993 = vmatpush2.msra.mxu0 0.0
  %994 = vmatprep.subr.mxu0 0.0
  %995 = vmatpush2.msra.mxu0 0.0
  %996 = vmatprep.subr.mxu0 0.0
  %997 = vmatpush2.msra.mxu0 0.0
  %998 = vmatprep.subr.mxu0 0.0
  %999 = vmatpush2.msra.mxu0 0.0
  %1000 = vmatprep.subr.mxu0 0.0
  %1001 = vmatpush2.msra.mxu0 0.0
  %1002 = vmatprep.subr.mxu0 0.0
  %1003 = vmatpush2.msra.mxu0 0.0
  %1004 = vmatprep.subr.mxu0 0.0
  %1005 = vmatpush2.msra.mxu0 0.0
  %1006 = vmatprep.subr.mxu0 0.0
  %1007 = vmatpush2.msra.mxu0 0.0
  %1008 = vmatprep.subr.mxu0 0.0
  %1009 = vmatpush2.msra.mxu0 0.0
  %1010 = vmatprep.subr.mxu0 0.0
  %1011 = vmatpush2.msra.mxu0 0.0
  %1012 = vmatprep.subr.mxu0 0.0
  %1013 = vmatpush2.msra.mxu0 0.0
  %1014 = vmatprep.subr.mxu0 0.0
  %1015 = vmatpush2.msra.mxu0 0.0
  %1016 = vmatprep.mubr.f32.mxu0 0.0
  %1017 = vmatmul.mubr.f32.gmra.mxu0 %v950
  %v1018 = vpop.f32.mrf.mxu0
  %v1019 = vadd.f32 %v167, %v1018
  %v1020 = vpop.f32.mrf.mxu0
  %v1021 = vadd.f32 %v178, %v1020
  %1022 = vdwg.mxu0
  %1023 = vmatprep.subr.mxu0 0.0
  %1024 = vmatpush1.msra.mxu0 0.0
  %1025 = vmatprep.subr.mxu0 0.0
  %1026 = vmatpush1.msra.mxu0 0.0
  %1027 = vmatprep.subr.mxu0 0.0
  %1028 = vmatpush1.msra.mxu0 0.0
  %1029 = vmatprep.subr.mxu0 0.0
  %1030 = vmatpush1.msra.mxu0 0.0
  %1031 = vmatprep.subr.mxu0 0.0
  %1032 = vmatpush1.msra.mxu0 %v218
  %1033 = vmatprep.subr.mxu0 0.0
  %1034 = vmatpush1.msra.mxu0 %v215
  %1035 = vmatprep.subr.mxu0 0.0
  %1036 = vmatpush1.msra.mxu0 %v212
  %1037 = vmatprep.subr.mxu0 0.0
  %1038 = vmatpush1.msra.mxu0 %v209
  %1039 = vmatprep.subr.mxu0 0.0
  %1040 = vmatpush1.msra.mxu0 %v206
  %1041 = vmatprep.subr.mxu0 0.0
  %1042 = vmatpush1.msra.mxu0 %v203
  %1043 = vmatprep.subr.mxu0 0.0
  %1044 = vmatpush1.msra.mxu0 %v200
  %1045 = vmatprep.subr.mxu0 0.0
  %1046 = vmatpush1.msra.mxu0 %v197
  %1047 = vmatprep.subr.mxu0 0.0
  %1048 = vmatpush1.msra.mxu0 %v194
  %1049 = vmatprep.subr.mxu0 0.0
  %1050 = vmatpush1.msra.mxu0 %v191
  %1051 = vmatprep.subr.mxu0 0.0
  %1052 = vmatpush1.msra.mxu0 %v188
  %1053 = vmatprep.subr.mxu0 0.0
  %1054 = vmatpush1.msra.mxu0 %v185
  %1055 = vmatprep.subr.mxu0 0.0
  %1056 = vmatpush2.msra.mxu0 0.0
  %1057 = vmatprep.subr.mxu0 0.0
  %1058 = vmatpush2.msra.mxu0 0.0
  %1059 = vmatprep.subr.mxu0 0.0
  %1060 = vmatpush2.msra.mxu0 0.0
  %1061 = vmatprep.subr.mxu0 0.0
  %1062 = vmatpush2.msra.mxu0 0.0
  %1063 = vmatprep.subr.mxu0 0.0
  %1064 = vmatpush2.msra.mxu0 0.0
  %1065 = vmatprep.subr.mxu0 0.0
  %1066 = vmatpush2.msra.mxu0 0.0
  %1067 = vmatprep.subr.mxu0 0.0
  %1068 = vmatpush2.msra.mxu0 0.0
  %1069 = vmatprep.subr.mxu0 0.0
  %1070 = vmatpush2.msra.mxu0 0.0
  %1071 = vmatprep.subr.mxu0 0.0
  %1072 = vmatpush2.msra.mxu0 0.0
  %1073 = vmatprep.subr.mxu0 0.0
  %1074 = vmatpush2.msra.mxu0 0.0
  %1075 = vmatprep.subr.mxu0 0.0
  %1076 = vmatpush2.msra.mxu0 0.0
  %1077 = vmatprep.subr.mxu0 0.0
  %1078 = vmatpush2.msra.mxu0 0.0
  %1079 = vmatprep.subr.mxu0 0.0
  %1080 = vmatpush2.msra.mxu0 0.0
  %1081 = vmatprep.subr.mxu0 0.0
  %1082 = vmatpush2.msra.mxu0 0.0
  %1083 = vmatprep.subr.mxu0 0.0
  %1084 = vmatpush2.msra.mxu0 0.0
  %1085 = vmatprep.subr.mxu0 0.0
  %1086 = vmatpush2.msra.mxu0 0.0
  %1087 = vmatprep.mubr.f32.mxu0 0.0
  %1088 = vmatmul.mubr.f32.gmra.mxu0 %v950
  %v1089 = vpop.f32.mrf.mxu0
  %v1090 = vadd.f32 %v182, %v1089
  %v1091 = vpop.f32.mrf.mxu0
  %1092 = vdwg.mxu0
  %v1093 = vxor.u32 %v1019, 2147483648
  %v1094 = vxor.u32 %v1021, 2147483648
  %v1095 = vxor.u32 %v1090, 2147483648
  %v1096 = vmul.f32 %v1093, 1.442695
  %v1097 = vpow.pop %v1096
  %v1098 = vmul.f32 %v1094, 1.442695
  %v1099 = vpow.pop %v1098
  %v1100 = vmul.f32 %v1095, 1.442695
  %v1101 = vpow.pop %v1100
  %v1102 = vadd.f32 %v1097, 1.0
  %v1103 = vadd.f32 %v1099, 1.0
  %v1104 = vadd.f32 %v1101, 1.0
  %v1105 = vrcp.pop %v1102
  %v1106 = vmul.f32 1.0, %v1105
  %v1107 = vrcp.pop %v1103
  %v1108 = vmul.f32 1.0, %v1107
  %v1109 = vrcp.pop %v1104
  %v1110 = vmul.f32 1.0, %v1109
  %v1111 = vtanh.pop %v1019
  %v1112 = vtanh.pop %v1021
  %v1113 = vtanh.pop %v1090
  %v1114 = vmul.f32 %v1106, %v894
  %1116 = vrot.lane.b32.xlu0 %v1111, 64
  %v1117 = vpop.permute.xlu0 %1116
  %v1119 = vmul.f32 %v1106, %v1117
  %1121 = vrot.lane.b32.xlu0 %v1119, 32
  %v1122 = vpop.permute.xlu0 %1121
  %v1124 = vadd.f32 %v1114, %v1122
  %v1125 = vtanh.pop %v1124
  %1127 = vrot.lane.b32.xlu0 %v1125, 64
  %v1128 = vpop.permute.xlu0 %1127
  %v1130 = vmul.f32 %v1106, %v1128
  %v1131 = vmul.f32 %v1108, %v911
  %1133 = vrot.lane.b32.xlu0 %v1112, 64
  %v1134 = vpop.permute.xlu0 %1133
  %v1136 = vmul.f32 %v1108, %v1134
  %1138 = vrot.lane.b32.xlu0 %v1136, 32
  %v1139 = vpop.permute.xlu0 %1138
  %v1141 = vadd.f32 %v1131, %v1139
  %v1142 = vtanh.pop %v1141
  %1144 = vrot.lane.b32.xlu0 %v1142, 64
  %v1145 = vpop.permute.xlu0 %1144
  %v1147 = vmul.f32 %v1108, %v1145
  %v1148 = vmul.f32 %v1110, %v928
  %1150 = vrot.lane.b32.xlu0 %v1113, 64
  %v1151 = vpop.permute.xlu0 %1150
  %v1153 = vmul.f32 %v1110, %v1151
  %1155 = vrot.lane.b32.xlu0 %v1153, 32
  %v1156 = vpop.permute.xlu0 %1155
  %v1158 = vadd.f32 %v1148, %v1156
  %v1159 = vtanh.pop %v1158
  %1161 = vrot.lane.b32.xlu0 %v1159, 64
  %v1162 = vpop.permute.xlu0 %1161
  %v1164 = vmul.f32 %v1110, %v1162
  %1166 = vrot.lane.b32.xlu0 %v1130, 32
  %v1167 = vpop.permute.xlu0 %1166
  %1170 = vrot.lane.b32.xlu0 %v1147, 64
  %v1171 = vpop.permute.xlu0 %1170
  %1174 = vrot.lane.b32.xlu0 %v1164, 96
  %v1175 = vpop.permute.xlu0 %1174
  %v1177 = vsel %vm237, %v1167, %v1171
  %v1178 = vsel %vm239, %v1177, %v1175
  %v1180 = vsel %vm241, %v1178, 0
  %1182 = vmatprep.subr.mxu0 0.0
  %1183 = vmatpush1.msra.mxu0 0.0
  %1184 = vmatprep.subr.mxu0 0.0
  %1185 = vmatpush1.msra.mxu0 0.0
  %1186 = vmatprep.subr.mxu0 0.0
  %1187 = vmatpush1.msra.mxu0 0.0
  %1188 = vmatprep.subr.mxu0 0.0
  %1189 = vmatpush1.msra.mxu0 0.0
  %1190 = vmatprep.subr.mxu0 %v217
  %1191 = vmatpush1.msra.mxu0 %v216
  %1192 = vmatprep.subr.mxu0 %v214
  %1193 = vmatpush1.msra.mxu0 %v213
  %1194 = vmatprep.subr.mxu0 %v211
  %1195 = vmatpush1.msra.mxu0 %v210
  %1196 = vmatprep.subr.mxu0 %v208
  %1197 = vmatpush1.msra.mxu0 %v207
  %1198 = vmatprep.subr.mxu0 %v205
  %1199 = vmatpush1.msra.mxu0 %v204
  %1200 = vmatprep.subr.mxu0 %v202
  %1201 = vmatpush1.msra.mxu0 %v201
  %1202 = vmatprep.subr.mxu0 %v199
  %1203 = vmatpush1.msra.mxu0 %v198
  %1204 = vmatprep.subr.mxu0 %v196
  %1205 = vmatpush1.msra.mxu0 %v195
  %1206 = vmatprep.subr.mxu0 %v193
  %1207 = vmatpush1.msra.mxu0 %v192
  %1208 = vmatprep.subr.mxu0 %v190
  %1209 = vmatpush1.msra.mxu0 %v189
  %1210 = vmatprep.subr.mxu0 %v187
  %1211 = vmatpush1.msra.mxu0 %v186
  %1212 = vmatprep.subr.mxu0 %v184
  %1213 = vmatpush1.msra.mxu0 %v183
  %1214 = vmatprep.subr.mxu0 0.0
  %1215 = vmatpush2.msra.mxu0 0.0
  %1216 = vmatprep.subr.mxu0 0.0
  %1217 = vmatpush2.msra.mxu0 0.0
  %1218 = vmatprep.subr.mxu0 0.0
  %1219 = vmatpush2.msra.mxu0 0.0
  %1220 = vmatprep.subr.mxu0 0.0
  %1221 = vmatpush2.msra.mxu0 0.0
  %1222 = vmatprep.subr.mxu0 0.0
  %1223 = vmatpush2.msra.mxu0 0.0
  %1224 = vmatprep.subr.mxu0 0.0
  %1225 = vmatpush2.msra.mxu0 0.0
  %1226 = vmatprep.subr.mxu0 0.0
  %1227 = vmatpush2.msra.mxu0 0.0
  %1228 = vmatprep.subr.mxu0 0.0
  %1229 = vmatpush2.msra.mxu0 0.0
  %1230 = vmatprep.subr.mxu0 0.0
  %1231 = vmatpush2.msra.mxu0 0.0
  %1232 = vmatprep.subr.mxu0 0.0
  %1233 = vmatpush2.msra.mxu0 0.0
  %1234 = vmatprep.subr.mxu0 0.0
  %1235 = vmatpush2.msra.mxu0 0.0
  %1236 = vmatprep.subr.mxu0 0.0
  %1237 = vmatpush2.msra.mxu0 0.0
  %1238 = vmatprep.subr.mxu0 0.0
  %1239 = vmatpush2.msra.mxu0 0.0
  %1240 = vmatprep.subr.mxu0 0.0
  %1241 = vmatpush2.msra.mxu0 0.0
  %1242 = vmatprep.subr.mxu0 0.0
  %1243 = vmatpush2.msra.mxu0 0.0
  %1244 = vmatprep.subr.mxu0 0.0
  %1245 = vmatpush2.msra.mxu0 0.0
  %1246 = vmatprep.mubr.f32.mxu0 0.0
  %1247 = vmatmul.mubr.f32.gmra.mxu0 %v1180
  %v1248 = vpop.f32.mrf.mxu0
  %v1249 = vadd.f32 %v168, %v1248
  %v1250 = vpop.f32.mrf.mxu0
  %v1251 = vadd.f32 %v178, %v1250
  %1252 = vdwg.mxu0
  %1253 = vmatprep.subr.mxu0 0.0
  %1254 = vmatpush1.msra.mxu0 0.0
  %1255 = vmatprep.subr.mxu0 0.0
  %1256 = vmatpush1.msra.mxu0 0.0
  %1257 = vmatprep.subr.mxu0 0.0
  %1258 = vmatpush1.msra.mxu0 0.0
  %1259 = vmatprep.subr.mxu0 0.0
  %1260 = vmatpush1.msra.mxu0 0.0
  %1261 = vmatprep.subr.mxu0 0.0
  %1262 = vmatpush1.msra.mxu0 %v218
  %1263 = vmatprep.subr.mxu0 0.0
  %1264 = vmatpush1.msra.mxu0 %v215
  %1265 = vmatprep.subr.mxu0 0.0
  %1266 = vmatpush1.msra.mxu0 %v212
  %1267 = vmatprep.subr.mxu0 0.0
  %1268 = vmatpush1.msra.mxu0 %v209
  %1269 = vmatprep.subr.mxu0 0.0
  %1270 = vmatpush1.msra.mxu0 %v206
  %1271 = vmatprep.subr.mxu0 0.0
  %1272 = vmatpush1.msra.mxu0 %v203
  %1273 = vmatprep.subr.mxu0 0.0
  %1274 = vmatpush1.msra.mxu0 %v200
  %1275 = vmatprep.subr.mxu0 0.0
  %1276 = vmatpush1.msra.mxu0 %v197
  %1277 = vmatprep.subr.mxu0 0.0
  %1278 = vmatpush1.msra.mxu0 %v194
  %1279 = vmatprep.subr.mxu0 0.0
  %1280 = vmatpush1.msra.mxu0 %v191
  %1281 = vmatprep.subr.mxu0 0.0
  %1282 = vmatpush1.msra.mxu0 %v188
  %1283 = vmatprep.subr.mxu0 0.0
  %1284 = vmatpush1.msra.mxu0 %v185
  %1285 = vmatprep.subr.mxu0 0.0
  %1286 = vmatpush2.msra.mxu0 0.0
  %1287 = vmatprep.subr.mxu0 0.0
  %1288 = vmatpush2.msra.mxu0 0.0
  %1289 = vmatprep.subr.mxu0 0.0
  %1290 = vmatpush2.msra.mxu0 0.0
  %1291 = vmatprep.subr.mxu0 0.0
  %1292 = vmatpush2.msra.mxu0 0.0
  %1293 = vmatprep.subr.mxu0 0.0
  %1294 = vmatpush2.msra.mxu0 0.0
  %1295 = vmatprep.subr.mxu0 0.0
  %1296 = vmatpush2.msra.mxu0 0.0
  %1297 = vmatprep.subr.mxu0 0.0
  %1298 = vmatpush2.msra.mxu0 0.0
  %1299 = vmatprep.subr.mxu0 0.0
  %1300 = vmatpush2.msra.mxu0 0.0
  %1301 = vmatprep.subr.mxu0 0.0
  %1302 = vmatpush2.msra.mxu0 0.0
  %1303 = vmatprep.subr.mxu0 0.0
  %1304 = vmatpush2.msra.mxu0 0.0
  %1305 = vmatprep.subr.mxu0 0.0
  %1306 = vmatpush2.msra.mxu0 0.0
  %1307 = vmatprep.subr.mxu0 0.0
  %1308 = vmatpush2.msra.mxu0 0.0
  %1309 = vmatprep.subr.mxu0 0.0
  %1310 = vmatpush2.msra.mxu0 0.0
  %1311 = vmatprep.subr.mxu0 0.0
  %1312 = vmatpush2.msra.mxu0 0.0
  %1313 = vmatprep.subr.mxu0 0.0
  %1314 = vmatpush2.msra.mxu0 0.0
  %1315 = vmatprep.subr.mxu0 0.0
  %1316 = vmatpush2.msra.mxu0 0.0
  %1317 = vmatprep.mubr.f32.mxu0 0.0
  %1318 = vmatmul.mubr.f32.gmra.mxu0 %v1180
  %v1319 = vpop.f32.mrf.mxu0
  %v1320 = vadd.f32 %v182, %v1319
  %v1321 = vpop.f32.mrf.mxu0
  %1322 = vdwg.mxu0
  %v1323 = vxor.u32 %v1249, 2147483648
  %v1324 = vxor.u32 %v1251, 2147483648
  %v1325 = vxor.u32 %v1320, 2147483648
  %v1326 = vmul.f32 %v1323, 1.442695
  %v1327 = vpow.pop %v1326
  %v1328 = vmul.f32 %v1324, 1.442695
  %v1329 = vpow.pop %v1328
  %v1330 = vmul.f32 %v1325, 1.442695
  %v1331 = vpow.pop %v1330
  %v1332 = vadd.f32 %v1327, 1.0
  %v1333 = vadd.f32 %v1329, 1.0
  %v1334 = vadd.f32 %v1331, 1.0
  %v1335 = vrcp.pop %v1332
  %v1336 = vmul.f32 1.0, %v1335
  %v1337 = vrcp.pop %v1333
  %v1338 = vmul.f32 1.0, %v1337
  %v1339 = vrcp.pop %v1334
  %v1340 = vmul.f32 1.0, %v1339
  %v1341 = vtanh.pop %v1249
  %v1342 = vtanh.pop %v1251
  %v1343 = vtanh.pop %v1320
  %v1344 = vmul.f32 %v1336, %v1124
  %1346 = vrot.lane.b32.xlu0 %v1341, 64
  %v1347 = vpop.permute.xlu0 %1346
  %v1349 = vmul.f32 %v1336, %v1347
  %1351 = vrot.lane.b32.xlu0 %v1349, 32
  %v1352 = vpop.permute.xlu0 %1351
  %v1354 = vadd.f32 %v1344, %v1352
  %v1355 = vtanh.pop %v1354
  %1357 = vrot.lane.b32.xlu0 %v1355, 64
  %v1358 = vpop.permute.xlu0 %1357
  %v1360 = vmul.f32 %v1336, %v1358
  %v1361 = vmul.f32 %v1338, %v1141
  %1363 = vrot.lane.b32.xlu0 %v1342, 64
  %v1364 = vpop.permute.xlu0 %1363
  %v1366 = vmul.f32 %v1338, %v1364
  %1368 = vrot.lane.b32.xlu0 %v1366, 32
  %v1369 = vpop.permute.xlu0 %1368
  %v1371 = vadd.f32 %v1361, %v1369
  %v1372 = vtanh.pop %v1371
  %1374 = vrot.lane.b32.xlu0 %v1372, 64
  %v1375 = vpop.permute.xlu0 %1374
  %v1377 = vmul.f32 %v1338, %v1375
  %v1378 = vmul.f32 %v1340, %v1158
  %1380 = vrot.lane.b32.xlu0 %v1343, 64
  %v1381 = vpop.permute.xlu0 %1380
  %v1383 = vmul.f32 %v1340, %v1381
  %1385 = vrot.lane.b32.xlu0 %v1383, 32
  %v1386 = vpop.permute.xlu0 %1385
  %v1388 = vadd.f32 %v1378, %v1386
  %v1389 = vtanh.pop %v1388
  %1391 = vrot.lane.b32.xlu0 %v1389, 64
  %v1392 = vpop.permute.xlu0 %1391
  %v1394 = vmul.f32 %v1340, %v1392
  %1396 = vrot.lane.b32.xlu0 %v1360, 32
  %v1397 = vpop.permute.xlu0 %1396
  %1400 = vrot.lane.b32.xlu0 %v1377, 64
  %v1401 = vpop.permute.xlu0 %1400
  %1404 = vrot.lane.b32.xlu0 %v1394, 96
  %v1405 = vpop.permute.xlu0 %1404
  %v1407 = vsel %vm237, %v1397, %v1401
  %v1408 = vsel %vm239, %v1407, %v1405
  %v1410 = vsel %vm241, %v1408, 0
  %1412 = vmatprep.subr.mxu0 0.0
  %1413 = vmatpush1.msra.mxu0 0.0
  %1414 = vmatprep.subr.mxu0 0.0
  %1415 = vmatpush1.msra.mxu0 0.0
  %1416 = vmatprep.subr.mxu0 0.0
  %1417 = vmatpush1.msra.mxu0 0.0
  %1418 = vmatprep.subr.mxu0 0.0
  %1419 = vmatpush1.msra.mxu0 0.0
  %1420 = vmatprep.subr.mxu0 %v217
  %1421 = vmatpush1.msra.mxu0 %v216
  %1422 = vmatprep.subr.mxu0 %v214
  %1423 = vmatpush1.msra.mxu0 %v213
  %1424 = vmatprep.subr.mxu0 %v211
  %1425 = vmatpush1.msra.mxu0 %v210
  %1426 = vmatprep.subr.mxu0 %v208
  %1427 = vmatpush1.msra.mxu0 %v207
  %1428 = vmatprep.subr.mxu0 %v205
  %1429 = vmatpush1.msra.mxu0 %v204
  %1430 = vmatprep.subr.mxu0 %v202
  %1431 = vmatpush1.msra.mxu0 %v201
  %1432 = vmatprep.subr.mxu0 %v199
  %1433 = vmatpush1.msra.mxu0 %v198
  %1434 = vmatprep.subr.mxu0 %v196
  %1435 = vmatpush1.msra.mxu0 %v195
  %1436 = vmatprep.subr.mxu0 %v193
  %1437 = vmatpush1.msra.mxu0 %v192
  %1438 = vmatprep.subr.mxu0 %v190
  %1439 = vmatpush1.msra.mxu0 %v189
  %1440 = vmatprep.subr.mxu0 %v187
  %1441 = vmatpush1.msra.mxu0 %v186
  %1442 = vmatprep.subr.mxu0 %v184
  %1443 = vmatpush1.msra.mxu0 %v183
  %1444 = vmatprep.subr.mxu0 0.0
  %1445 = vmatpush2.msra.mxu0 0.0
  %1446 = vmatprep.subr.mxu0 0.0
  %1447 = vmatpush2.msra.mxu0 0.0
  %1448 = vmatprep.subr.mxu0 0.0
  %1449 = vmatpush2.msra.mxu0 0.0
  %1450 = vmatprep.subr.mxu0 0.0
  %1451 = vmatpush2.msra.mxu0 0.0
  %1452 = vmatprep.subr.mxu0 0.0
  %1453 = vmatpush2.msra.mxu0 0.0
  %1454 = vmatprep.subr.mxu0 0.0
  %1455 = vmatpush2.msra.mxu0 0.0
  %1456 = vmatprep.subr.mxu0 0.0
  %1457 = vmatpush2.msra.mxu0 0.0
  %1458 = vmatprep.subr.mxu0 0.0
  %1459 = vmatpush2.msra.mxu0 0.0
  %1460 = vmatprep.subr.mxu0 0.0
  %1461 = vmatpush2.msra.mxu0 0.0
  %1462 = vmatprep.subr.mxu0 0.0
  %1463 = vmatpush2.msra.mxu0 0.0
  %1464 = vmatprep.subr.mxu0 0.0
  %1465 = vmatpush2.msra.mxu0 0.0
  %1466 = vmatprep.subr.mxu0 0.0
  %1467 = vmatpush2.msra.mxu0 0.0
  %1468 = vmatprep.subr.mxu0 0.0
  %1469 = vmatpush2.msra.mxu0 0.0
  %1470 = vmatprep.subr.mxu0 0.0
  %1471 = vmatpush2.msra.mxu0 0.0
  %1472 = vmatprep.subr.mxu0 0.0
  %1473 = vmatpush2.msra.mxu0 0.0
  %1474 = vmatprep.subr.mxu0 0.0
  %1475 = vmatpush2.msra.mxu0 0.0
  %1476 = vmatprep.mubr.f32.mxu0 0.0
  %1477 = vmatmul.mubr.f32.gmra.mxu0 %v1410
  %v1478 = vpop.f32.mrf.mxu0
  %v1479 = vpop.f32.mrf.mxu0
  %v1480 = vadd.f32 %v178, %v1479
  %1481 = vdwg.mxu0
  %1482 = vmatprep.subr.mxu0 0.0
  %1483 = vmatpush1.msra.mxu0 0.0
  %1484 = vmatprep.subr.mxu0 0.0
  %1485 = vmatpush1.msra.mxu0 0.0
  %1486 = vmatprep.subr.mxu0 0.0
  %1487 = vmatpush1.msra.mxu0 0.0
  %1488 = vmatprep.subr.mxu0 0.0
  %1489 = vmatpush1.msra.mxu0 0.0
  %1490 = vmatprep.subr.mxu0 0.0
  %1491 = vmatpush1.msra.mxu0 %v218
  %1492 = vmatprep.subr.mxu0 0.0
  %1493 = vmatpush1.msra.mxu0 %v215
  %1494 = vmatprep.subr.mxu0 0.0
  %1495 = vmatpush1.msra.mxu0 %v212
  %1496 = vmatprep.subr.mxu0 0.0
  %1497 = vmatpush1.msra.mxu0 %v209
  %1498 = vmatprep.subr.mxu0 0.0
  %1499 = vmatpush1.msra.mxu0 %v206
  %1500 = vmatprep.subr.mxu0 0.0
  %1501 = vmatpush1.msra.mxu0 %v203
  %1502 = vmatprep.subr.mxu0 0.0
  %1503 = vmatpush1.msra.mxu0 %v200
  %1504 = vmatprep.subr.mxu0 0.0
  %1505 = vmatpush1.msra.mxu0 %v197
  %1506 = vmatprep.subr.mxu0 0.0
  %1507 = vmatpush1.msra.mxu0 %v194
  %1508 = vmatprep.subr.mxu0 0.0
  %1509 = vmatpush1.msra.mxu0 %v191
  %1510 = vmatprep.subr.mxu0 0.0
  %1511 = vmatpush1.msra.mxu0 %v188
  %1512 = vmatprep.subr.mxu0 0.0
  %1513 = vmatpush1.msra.mxu0 %v185
  %1514 = vmatprep.subr.mxu0 0.0
  %1515 = vmatpush2.msra.mxu0 0.0
  %1516 = vmatprep.subr.mxu0 0.0
  %1517 = vmatpush2.msra.mxu0 0.0
  %1518 = vmatprep.subr.mxu0 0.0
  %1519 = vmatpush2.msra.mxu0 0.0
  %1520 = vmatprep.subr.mxu0 0.0
  %1521 = vmatpush2.msra.mxu0 0.0
  %1522 = vmatprep.subr.mxu0 0.0
  %1523 = vmatpush2.msra.mxu0 0.0
  %1524 = vmatprep.subr.mxu0 0.0
  %1525 = vmatpush2.msra.mxu0 0.0
  %1526 = vmatprep.subr.mxu0 0.0
  %1527 = vmatpush2.msra.mxu0 0.0
  %1528 = vmatprep.subr.mxu0 0.0
  %1529 = vmatpush2.msra.mxu0 0.0
  %1530 = vmatprep.subr.mxu0 0.0
  %1531 = vmatpush2.msra.mxu0 0.0
  %1532 = vmatprep.subr.mxu0 0.0
  %1533 = vmatpush2.msra.mxu0 0.0
  %1534 = vmatprep.subr.mxu0 0.0
  %1535 = vmatpush2.msra.mxu0 0.0
  %1536 = vmatprep.subr.mxu0 0.0
  %1537 = vmatpush2.msra.mxu0 0.0
  %1538 = vmatprep.subr.mxu0 0.0
  %1539 = vmatpush2.msra.mxu0 0.0
  %1540 = vmatprep.subr.mxu0 0.0
  %1541 = vmatpush2.msra.mxu0 0.0
  %1542 = vmatprep.subr.mxu0 0.0
  %1543 = vmatpush2.msra.mxu0 0.0
  %1544 = vmatprep.subr.mxu0 0.0
  %1545 = vmatpush2.msra.mxu0 0.0
  %1546 = vmatprep.mubr.f32.mxu0 0.0
  %1547 = vmatmul.mubr.f32.gmra.mxu0 %v1410
  %v1548 = vpop.f32.mrf.mxu0
  %v1549 = vadd.f32 %v182, %v1548
  %v1550 = vpop.f32.mrf.mxu0
  %1551 = vdwg.mxu0
  %v1552 = vxor.u32 %v1480, 2147483648
  %v1553 = vxor.u32 %v1549, 2147483648
  %v1554 = vmul.f32 %v1552, 1.442695
  %v1555 = vpow.pop %v1554
  %v1556 = vmul.f32 %v1553, 1.442695
  %v1557 = vpow.pop %v1556
  %v1558 = vadd.f32 %v1555, 1.0
  %v1559 = vadd.f32 %v1557, 1.0
  %v1560 = vrcp.pop %v1558
  %v1561 = vmul.f32 1.0, %v1560
  %v1562 = vrcp.pop %v1559
  %v1563 = vmul.f32 1.0, %v1562
  %v1564 = vtanh.pop %v1480
  %v1565 = vtanh.pop %v1549
  %v1566 = vmul.f32 %v1561, %v1371
  %1568 = vrot.lane.b32.xlu0 %v1564, 64
  %v1569 = vpop.permute.xlu0 %1568
  %v1571 = vmul.f32 %v1561, %v1569
  %1573 = vrot.lane.b32.xlu0 %v1571, 32
  %v1574 = vpop.permute.xlu0 %1573
  %v1576 = vadd.f32 %v1566, %v1574
  %v1577 = vtanh.pop %v1576
  %1579 = vrot.lane.b32.xlu0 %v1577, 64
  %v1580 = vpop.permute.xlu0 %1579
  %v1582 = vmul.f32 %v1561, %v1580
  %v1583 = vmul.f32 %v1563, %v1388
  %1585 = vrot.lane.b32.xlu0 %v1565, 64
  %v1586 = vpop.permute.xlu0 %1585
  %v1588 = vmul.f32 %v1563, %v1586
  %1590 = vrot.lane.b32.xlu0 %v1588, 32
  %v1591 = vpop.permute.xlu0 %1590
  %v1593 = vadd.f32 %v1583, %v1591
  %v1594 = vtanh.pop %v1593
  %1596 = vrot.lane.b32.xlu0 %v1594, 64
  %v1597 = vpop.permute.xlu0 %1596
  %v1599 = vmul.f32 %v1563, %v1597
  %1601 = vrot.lane.b32.xlu0 %v1582, 64
  %v1602 = vpop.permute.xlu0 %1601
  %1605 = vrot.lane.b32.xlu0 %v1599, 96
  %v1606 = vpop.permute.xlu0 %1605
  %v1608 = vsel %vm237, %v1397, %v1602
  %v1609 = vsel %vm239, %v1608, %v1606
  %v1611 = vsel %vm241, %v1609, 0
  %1613 = vmatprep.subr.mxu0 0.0
  %1614 = vmatpush1.msra.mxu0 0.0
  %1615 = vmatprep.subr.mxu0 0.0
  %1616 = vmatpush1.msra.mxu0 0.0
  %1617 = vmatprep.subr.mxu0 0.0
  %1618 = vmatpush1.msra.mxu0 0.0
  %1619 = vmatprep.subr.mxu0 0.0
  %1620 = vmatpush1.msra.mxu0 0.0
  %1621 = vmatprep.subr.mxu0 0.0
  %1622 = vmatpush1.msra.mxu0 %v218
  %1623 = vmatprep.subr.mxu0 0.0
  %1624 = vmatpush1.msra.mxu0 %v215
  %1625 = vmatprep.subr.mxu0 0.0
  %1626 = vmatpush1.msra.mxu0 %v212
  %1627 = vmatprep.subr.mxu0 0.0
  %1628 = vmatpush1.msra.mxu0 %v209
  %1629 = vmatprep.subr.mxu0 0.0
  %1630 = vmatpush1.msra.mxu0 %v206
  %1631 = vmatprep.subr.mxu0 0.0
  %1632 = vmatpush1.msra.mxu0 %v203
  %1633 = vmatprep.subr.mxu0 0.0
  %1634 = vmatpush1.msra.mxu0 %v200
  %1635 = vmatprep.subr.mxu0 0.0
  %1636 = vmatpush1.msra.mxu0 %v197
  %1637 = vmatprep.subr.mxu0 0.0
  %1638 = vmatpush1.msra.mxu0 %v194
  %1639 = vmatprep.subr.mxu0 0.0
  %1640 = vmatpush1.msra.mxu0 %v191
  %1641 = vmatprep.subr.mxu0 0.0
  %1642 = vmatpush1.msra.mxu0 %v188
  %1643 = vmatprep.subr.mxu0 0.0
  %1644 = vmatpush1.msra.mxu0 %v185
  %1645 = vmatprep.subr.mxu0 0.0
  %1646 = vmatpush2.msra.mxu0 0.0
  %1647 = vmatprep.subr.mxu0 0.0
  %1648 = vmatpush2.msra.mxu0 0.0
  %1649 = vmatprep.subr.mxu0 0.0
  %1650 = vmatpush2.msra.mxu0 0.0
  %1651 = vmatprep.subr.mxu0 0.0
  %1652 = vmatpush2.msra.mxu0 0.0
  %1653 = vmatprep.subr.mxu0 0.0
  %1654 = vmatpush2.msra.mxu0 0.0
  %1655 = vmatprep.subr.mxu0 0.0
  %1656 = vmatpush2.msra.mxu0 0.0
  %1657 = vmatprep.subr.mxu0 0.0
  %1658 = vmatpush2.msra.mxu0 0.0
  %1659 = vmatprep.subr.mxu0 0.0
  %1660 = vmatpush2.msra.mxu0 0.0
  %1661 = vmatprep.subr.mxu0 0.0
  %1662 = vmatpush2.msra.mxu0 0.0
  %1663 = vmatprep.subr.mxu0 0.0
  %1664 = vmatpush2.msra.mxu0 0.0
  %1665 = vmatprep.subr.mxu0 0.0
  %1666 = vmatpush2.msra.mxu0 0.0
  %1667 = vmatprep.subr.mxu0 0.0
  %1668 = vmatpush2.msra.mxu0 0.0
  %1669 = vmatprep.subr.mxu0 0.0
  %1670 = vmatpush2.msra.mxu0 0.0
  %1671 = vmatprep.subr.mxu0 0.0
  %1672 = vmatpush2.msra.mxu0 0.0
  %1673 = vmatprep.subr.mxu0 0.0
  %1674 = vmatpush2.msra.mxu0 0.0
  %1675 = vmatprep.subr.mxu0 0.0
  %1676 = vmatpush2.msra.mxu0 0.0
  %1677 = vmatprep.mubr.f32.mxu0 0.0
  %1678 = vmatmul.mubr.f32.gmra.mxu0 %v1611
  %v1679 = vpop.f32.mrf.mxu0
  %v1680 = vadd.f32 %v182, %v1679
  %v1681 = vpop.f32.mrf.mxu0
  %1682 = vdwg.mxu0
  %v1683 = vxor.u32 %v1680, 2147483648
  %v1684 = vmul.f32 %v1683, 1.442695
  %v1685 = vpow.pop %v1684
  %v1686 = vadd.f32 %v1685, 1.0
  %v1687 = vrcp.pop %v1686
  %v1688 = vmul.f32 1.0, %v1687
  %v1689 = vtanh.pop %v1680
  %v1690 = vmul.f32 %v1688, %v1593
  %1692 = vrot.lane.b32.xlu0 %v1689, 64
  %v1693 = vpop.permute.xlu0 %1692
  %v1695 = vmul.f32 %v1688, %v1693
  %1697 = vrot.lane.b32.xlu0 %v1695, 32
  %v1698 = vpop.permute.xlu0 %1697
  %v1700 = vadd.f32 %v1690, %v1698
  %v1701 = vtanh.pop %v1700
  %1703 = vrot.lane.b32.xlu0 %v1701, 64
  %v1704 = vpop.permute.xlu0 %1703
  %v1706 = vmul.f32 %v1688, %v1704
  %v1708 = vunpack.c.l.s4 1966171168
  %v1709 = vunpack.c.0.s8 %v1708
  %v1710 = vlaneseq
  %v1711 = vshrl.u32 %v1710, 7
  %v1712 = vsub.s32 %v1709, %v1711
  %v1713 = vrot.slane %v704, %v1712
  %v1714 = vcombine.high %v1713, %v1713
  %v1716 = vunpack.c.l.s4 1966171168
  %v1717 = vunpack.c.0.s8 %v1716
  %v1718 = vlaneseq
  %v1719 = vshrl.u32 %v1718, 7
  %v1720 = vsub.s32 %v1717, %v1719
  %v1721 = vrot.slane %v1713, %v1720
  %v1723 = vunpack.c.l.s4 1966171168
  %v1724 = vunpack.c.0.s8 %v1723
  %v1725 = vlaneseq
  %v1726 = vshrl.u32 %v1725, 7
  %v1727 = vsub.s32 %v1724, %v1726
  %v1728 = vrot.slane %v1714, %v1727
  %v1732 = vunpack.c.l.s4 1966171168
  %v1733 = vunpack.c.0.s8 %v1732
  %v1734 = vlaneseq
  %v1735 = vshrl.u32 %v1734, 7
  %v1736 = vsub.s32 %v1733, %v1735
  %v1737 = vrot.slane %v934, %v1736
  %v1738 = vcombine.high %v1737, %v1737
  %v1740 = vunpack.c.l.s4 1966171168
  %v1741 = vunpack.c.0.s8 %v1740
  %v1742 = vlaneseq
  %v1743 = vshrl.u32 %v1742, 7
  %v1744 = vsub.s32 %v1741, %v1743
  %v1745 = vrot.slane %v1737, %v1744
  %v1747 = vunpack.c.l.s4 1966171168
  %v1748 = vunpack.c.0.s8 %v1747
  %v1749 = vlaneseq
  %v1750 = vshrl.u32 %v1749, 7
  %v1751 = vsub.s32 %v1748, %v1750
  %v1752 = vrot.slane %v1738, %v1751
  %v1754 = vunpack.c.l.s4 1966171168
  %v1755 = vunpack.c.0.s8 %v1754
  %v1756 = vlaneseq
  %v1757 = vshrl.u32 %v1756, 7
  %v1758 = vsub.s32 %v1755, %v1757
  %v1759 = vrot.slane %v1164, %v1758
  %v1760 = vcombine.high %v1759, %v1759
  %v1762 = vunpack.c.l.s4 1966171168
  %v1763 = vunpack.c.0.s8 %v1762
  %v1764 = vlaneseq
  %v1765 = vshrl.u32 %v1764, 7
  %v1766 = vsub.s32 %v1763, %v1765
  %v1767 = vrot.slane %v1759, %v1766
  %v1769 = vunpack.c.l.s4 1966171168
  %v1770 = vunpack.c.0.s8 %v1769
  %v1771 = vlaneseq
  %v1772 = vshrl.u32 %v1771, 7
  %v1773 = vsub.s32 %v1770, %v1772
  %v1774 = vrot.slane %v1760, %v1773
  %v1776 = vunpack.c.l.s4 1966171168
  %v1777 = vunpack.c.0.s8 %v1776
  %v1778 = vlaneseq
  %v1779 = vshrl.u32 %v1778, 7
  %v1780 = vsub.s32 %v1777, %v1779
  %v1781 = vrot.slane %v1394, %v1780
  %v1782 = vcombine.high %v1781, %v1781
  %v1784 = vunpack.c.l.s4 1966171168
  %v1785 = vunpack.c.0.s8 %v1784
  %v1786 = vlaneseq
  %v1787 = vshrl.u32 %v1786, 7
  %v1788 = vsub.s32 %v1785, %v1787
  %v1789 = vrot.slane %v1781, %v1788
  %v1791 = vunpack.c.l.s4 1966171168
  %v1792 = vunpack.c.0.s8 %v1791
  %v1793 = vlaneseq
  %v1794 = vshrl.u32 %v1793, 7
  %v1795 = vsub.s32 %v1792, %v1794
  %v1796 = vrot.slane %v1782, %v1795
  %v1798 = vunpack.c.l.s4 1966171168
  %v1799 = vunpack.c.0.s8 %v1798
  %v1800 = vlaneseq
  %v1801 = vshrl.u32 %v1800, 7
  %v1802 = vsub.s32 %v1799, %v1801
  %v1803 = vrot.slane %v1599, %v1802
  %v1804 = vcombine.high %v1803, %v1803
  %v1806 = vunpack.c.l.s4 1966171168
  %v1807 = vunpack.c.0.s8 %v1806
  %v1808 = vlaneseq
  %v1809 = vshrl.u32 %v1808, 7
  %v1810 = vsub.s32 %v1807, %v1809
  %v1811 = vrot.slane %v1803, %v1810
  %v1813 = vunpack.c.l.s4 1966171168
  %v1814 = vunpack.c.0.s8 %v1813
  %v1815 = vlaneseq
  %v1816 = vshrl.u32 %v1815, 7
  %v1817 = vsub.s32 %v1814, %v1816
  %v1818 = vrot.slane %v1804, %v1817
  %v1821 = vunpack.c.l.s4 1966171168
  %v1822 = vunpack.c.0.s8 %v1821
  %v1823 = vlaneseq
  %v1824 = vshrl.u32 %v1823, 7
  %v1825 = vsub.s32 %v1822, %v1824
  %v1826 = vrot.slane %v1706, %v1825
  %v1827 = vcombine.high %v1826, %v1826
  %v1829 = vunpack.c.l.s4 1966171168
  %v1830 = vunpack.c.0.s8 %v1829
  %v1831 = vlaneseq
  %v1832 = vshrl.u32 %v1831, 7
  %v1833 = vsub.s32 %v1830, %v1832
  %v1834 = vrot.slane %v1826, %v1833
  %v1836 = vunpack.c.l.s4 1966171168
  %v1837 = vunpack.c.0.s8 %v1836
  %v1838 = vlaneseq
  %v1839 = vshrl.u32 %v1838, 7
  %v1840 = vsub.s32 %v1837, %v1839
  %v1841 = vrot.slane %v1827, %v1840
  %v1842 = vlaneseq
  %v1843 = vshrl.u32 %v1842, 7
  %v1844 = vsub.s32 0, %v1843
  %v1845 = vrot.slane %v1745, %v1844
  %v1846 = vlaneseq
  %v1847 = vshrl.u32 %v1846, 7
  %v1848 = vsub.s32 0, %v1847
  %v1849 = vrot.slane %v1752, %v1848
  %v1852 = vlaneseq
  %v1853 = vshrl.u32 %v1852, 7
  %v1854 = vsub.s32 0, %v1853
  %v1855 = vrot.slane %v1767, %v1854
  %v1856 = vlaneseq
  %v1857 = vshrl.u32 %v1856, 7
  %v1858 = vsub.s32 0, %v1857
  %v1859 = vrot.slane %v1774, %v1858
  %v1862 = vlaneseq
  %v1863 = vshrl.u32 %v1862, 7
  %v1864 = vsub.s32 0, %v1863
  %v1865 = vrot.slane %v1789, %v1864
  %v1866 = vlaneseq
  %v1867 = vshrl.u32 %v1866, 7
  %v1868 = vsub.s32 0, %v1867
  %v1869 = vrot.slane %v1796, %v1868
  %v1872 = vlaneseq
  %v1873 = vshrl.u32 %v1872, 7
  %v1874 = vsub.s32 0, %v1873
  %v1875 = vrot.slane %v1811, %v1874
  %v1876 = vlaneseq
  %v1877 = vshrl.u32 %v1876, 7
  %v1878 = vsub.s32 0, %v1877
  %v1879 = vrot.slane %v1818, %v1878
  %v1882 = vlaneseq
  %v1883 = vshrl.u32 %v1882, 7
  %v1884 = vsub.s32 0, %v1883
  %v1885 = vrot.slane %v1834, %v1884
  %v1886 = vlaneseq
  %v1887 = vshrl.u32 %v1886, 7
  %v1888 = vsub.s32 0, %v1887
  %v1889 = vrot.slane %v1841, %v1888
  %vm1892 = vcmask 1040384
  %v1893 = vsel %vm1892, %v1721, %v1845
  %v1894 = vsel %vm1892, %v1728, %v1849
  %vm1895 = vcmask 1041408
  %v1896 = vsel %vm1895, %v1893, %v1855
  %v1897 = vsel %vm1895, %v1894, %v1859
  %vm1898 = vcmask 1042432
  %v1899 = vsel %vm1898, %v1896, %v1865
  %v1900 = vsel %vm1898, %v1897, %v1869
  %vm1901 = vcmask 1043456
  %v1902 = vsel %vm1901, %v1899, %v1875
  %v1903 = vsel %vm1901, %v1900, %v1879
  %vm1904 = vcmask 1044480
  %v1905 = vsel %vm1904, %v1902, %v1885
  %v1906 = vsel %vm1904, %v1903, %v1889
  %v1907 = vld [vmem:[%s6] sm:$0xff]
  %v1908 = vld [vmem:[%s6 + $0x8] sm:$0xff]
  %v1909 = vld [vmem:[%s6 + $0x10] sm:$0xff]
  %v1910 = vld [vmem:[%s6 + $0x18] sm:$0xff]
  %v1911 = vld [vmem:[%s6 + $0x20] sm:$0xff]
  %v1912 = vld [vmem:[%s6 + $0x28] sm:$0xff]
  %v1913 = vld [vmem:[%s6 + $0x30] sm:$0xff]
  %v1914 = vld [vmem:[%s6 + $0x38] sm:$0xff]
  %1916 = vrot.lane.b32.xlu0 %v1905, 32
  %v1917 = vpop.permute.xlu0 %1916
  %v1918 = vsel %vm237, %v1917, 0
  %1920 = vmatprep.subr.mxu0 0.0
  %1921 = vmatpush1.msra.mxu0 0.0
  %1922 = vmatprep.subr.mxu0 0.0
  %1923 = vmatpush1.msra.mxu0 0.0
  %1924 = vmatprep.subr.mxu0 0.0
  %1925 = vmatpush1.msra.mxu0 0.0
  %1926 = vmatprep.subr.mxu0 0.0
  %1927 = vmatpush1.msra.mxu0 0.0
  %1928 = vmatprep.subr.mxu0 0.0
  %1929 = vmatpush1.msra.mxu0 0.0
  %1930 = vmatprep.subr.mxu0 0.0
  %1931 = vmatpush1.msra.mxu0 0.0
  %1932 = vmatprep.subr.mxu0 0.0
  %1933 = vmatpush1.msra.mxu0 0.0
  %1934 = vmatprep.subr.mxu0 0.0
  %1935 = vmatpush1.msra.mxu0 0.0
  %1936 = vmatprep.subr.mxu0 0.0
  %1937 = vmatpush1.msra.mxu0 0.0
  %1938 = vmatprep.subr.mxu0 0.0
  %1939 = vmatpush1.msra.mxu0 0.0
  %1940 = vmatprep.subr.mxu0 0.0
  %1941 = vmatpush1.msra.mxu0 0.0
  %1942 = vmatprep.subr.mxu0 0.0
  %1943 = vmatpush1.msra.mxu0 0.0
  %1944 = vmatprep.subr.mxu0 0.0
  %1945 = vmatpush1.msra.mxu0 %v1910
  %1946 = vmatprep.subr.mxu0 0.0
  %1947 = vmatpush1.msra.mxu0 %v1909
  %1948 = vmatprep.subr.mxu0 0.0
  %1949 = vmatpush1.msra.mxu0 %v1908
  %1950 = vmatprep.subr.mxu0 0.0
  %1951 = vmatpush1.msra.mxu0 %v1907
  %1952 = vmatprep.subr.mxu0 0.0
  %1953 = vmatpush2.msra.mxu0 0.0
  %1954 = vmatprep.subr.mxu0 0.0
  %1955 = vmatpush2.msra.mxu0 0.0
  %1956 = vmatprep.subr.mxu0 0.0
  %1957 = vmatpush2.msra.mxu0 0.0
  %1958 = vmatprep.subr.mxu0 0.0
  %1959 = vmatpush2.msra.mxu0 0.0
  %1960 = vmatprep.subr.mxu0 0.0
  %1961 = vmatpush2.msra.mxu0 0.0
  %1962 = vmatprep.subr.mxu0 0.0
  %1963 = vmatpush2.msra.mxu0 0.0
  %1964 = vmatprep.subr.mxu0 0.0
  %1965 = vmatpush2.msra.mxu0 0.0
  %1966 = vmatprep.subr.mxu0 0.0
  %1967 = vmatpush2.msra.mxu0 0.0
  %1968 = vmatprep.subr.mxu0 0.0
  %1969 = vmatpush2.msra.mxu0 0.0
  %1970 = vmatprep.subr.mxu0 0.0
  %1971 = vmatpush2.msra.mxu0 0.0
  %1972 = vmatprep.subr.mxu0 0.0
  %1973 = vmatpush2.msra.mxu0 0.0
  %1974 = vmatprep.subr.mxu0 0.0
  %1975 = vmatpush2.msra.mxu0 0.0
  %1976 = vmatprep.subr.mxu0 0.0
  %1977 = vmatpush2.msra.mxu0 0.0
  %1978 = vmatprep.subr.mxu0 0.0
  %1979 = vmatpush2.msra.mxu0 0.0
  %1980 = vmatprep.subr.mxu0 0.0
  %1981 = vmatpush2.msra.mxu0 0.0
  %1982 = vmatprep.subr.mxu0 0.0
  %1983 = vmatpush2.msra.mxu0 0.0
  %1984 = vmatprep.mubr.f32.mxu0 0.0
  %1985 = vmatmul.mubr.f32.gmra.mxu0 %v1918
  %v1986 = vpop.f32.mrf.mxu0
  %v1987 = vadd.f32 0.0, %v1986
  %v1988 = vpop.f32.mrf.mxu0
  %1989 = vdwg.mxu0
  %1991 = vrot.lane.b32.xlu0 %v1906, 32
  %v1992 = vpop.permute.xlu0 %1991
  %v1993 = vsel %vm237, %v1992, 0
  %1995 = vmatprep.subr.mxu0 0.0
  %1996 = vmatpush1.msra.mxu0 0.0
  %1997 = vmatprep.subr.mxu0 0.0
  %1998 = vmatpush1.msra.mxu0 0.0
  %1999 = vmatprep.subr.mxu0 0.0
  %2000 = vmatpush1.msra.mxu0 0.0
  %2001 = vmatprep.subr.mxu0 0.0
  %2002 = vmatpush1.msra.mxu0 0.0
  %2003 = vmatprep.subr.mxu0 0.0
  %2004 = vmatpush1.msra.mxu0 0.0
  %2005 = vmatprep.subr.mxu0 0.0
  %2006 = vmatpush1.msra.mxu0 0.0
  %2007 = vmatprep.subr.mxu0 0.0
  %2008 = vmatpush1.msra.mxu0 0.0
  %2009 = vmatprep.subr.mxu0 0.0
  %2010 = vmatpush1.msra.mxu0 0.0
  %2011 = vmatprep.subr.mxu0 0.0
  %2012 = vmatpush1.msra.mxu0 0.0
  %2013 = vmatprep.subr.mxu0 0.0
  %2014 = vmatpush1.msra.mxu0 0.0
  %2015 = vmatprep.subr.mxu0 0.0
  %2016 = vmatpush1.msra.mxu0 0.0
  %2017 = vmatprep.subr.mxu0 0.0
  %2018 = vmatpush1.msra.mxu0 0.0
  %2019 = vmatprep.subr.mxu0 0.0
  %2020 = vmatpush1.msra.mxu0 %v1914
  %2021 = vmatprep.subr.mxu0 0.0
  %2022 = vmatpush1.msra.mxu0 %v1913
  %2023 = vmatprep.subr.mxu0 0.0
  %2024 = vmatpush1.msra.mxu0 %v1912
  %2025 = vmatprep.subr.mxu0 0.0
  %2026 = vmatpush1.msra.mxu0 %v1911
  %2027 = vmatprep.subr.mxu0 0.0
  %2028 = vmatpush2.msra.mxu0 0.0
  %2029 = vmatprep.subr.mxu0 0.0
  %2030 = vmatpush2.msra.mxu0 0.0
  %2031 = vmatprep.subr.mxu0 0.0
  %2032 = vmatpush2.msra.mxu0 0.0
  %2033 = vmatprep.subr.mxu0 0.0
  %2034 = vmatpush2.msra.mxu0 0.0
  %2035 = vmatprep.subr.mxu0 0.0
  %2036 = vmatpush2.msra.mxu0 0.0
  %2037 = vmatprep.subr.mxu0 0.0
  %2038 = vmatpush2.msra.mxu0 0.0
  %2039 = vmatprep.subr.mxu0 0.0
  %2040 = vmatpush2.msra.mxu0 0.0
  %2041 = vmatprep.subr.mxu0 0.0
  %2042 = vmatpush2.msra.mxu0 0.0
  %2043 = vmatprep.subr.mxu0 0.0
  %2044 = vmatpush2.msra.mxu0 0.0
  %2045 = vmatprep.subr.mxu0 0.0
  %2046 = vmatpush2.msra.mxu0 0.0
  %2047 = vmatprep.subr.mxu0 0.0
  %2048 = vmatpush2.msra.mxu0 0.0
  %2049 = vmatprep.subr.mxu0 0.0
  %2050 = vmatpush2.msra.mxu0 0.0
  %2051 = vmatprep.subr.mxu0 0.0
  %2052 = vmatpush2.msra.mxu0 0.0
  %2053 = vmatprep.subr.mxu0 0.0
  %2054 = vmatpush2.msra.mxu0 0.0
  %2055 = vmatprep.subr.mxu0 0.0
  %2056 = vmatpush2.msra.mxu0 0.0
  %2057 = vmatprep.subr.mxu0 0.0
  %2058 = vmatpush2.msra.mxu0 0.0
  %2059 = vmatprep.mubr.f32.mxu0 0.0
  %2060 = vmatmul.mubr.f32.gmra.mxu0 %v1993
  %v2061 = vpop.f32.mrf.mxu0
  %v2062 = vadd.f32 0.0, %v2061
  %v2063 = vpop.f32.mrf.mxu0
  %2064 = vdwg.mxu0
  %vm2065 = vcmask 78848
  %v2066 = vsel %vm2065, %v1987, -inf
  %2067 = vmax.xlane.f32.xlu0 %v2066
  %v2068 = vpop.xlane.xlu0 %2067
  %v2069 = vsel %vm2065, %v2062, -inf
  %2070 = vmax.xlane.f32.xlu0 %v2069
  %v2071 = vpop.xlane.xlu0 %2070
  %v2072 = vsub.f32 %v1987, %v2068
  %v2073 = vsub.f32 %v2062, %v2071
  %v2074 = vmul.f32 %v2072, 1.442695
  %v2075 = vpow.pop %v2074
  %v2076 = vmul.f32 %v2073, 1.442695
  %v2077 = vpow.pop %v2076
  %v2078 = vsel %vm2065, %v2075, 0.0
  %2079 = vadd.xlane.f32.xlu0 %v2078
  %v2080 = vpop.xlane.xlu0 %2079
  %v2081 = vsel %vm2065, %v2077, 0.0
  %2082 = vadd.xlane.f32.xlu0 %v2081
  %v2083 = vpop.xlane.xlu0 %2082
  %v2084 = vrcp.pop %v2080
  %v2085 = vmul.f32 %v2075, %v2084
  %v2086 = vrcp.pop %v2083
  %v2087 = vmul.f32 %v2077, %v2086
  %v2088 = vld [vmem:[%s5] sm:$0xff]
  %v2089 = vld [vmem:[%s5 + $0x8] sm:$0x3]
  %v2090 = vld [vmem:[%s5 + $0x10] sm:$0xff]
  %v2091 = vld [vmem:[%s5 + $0x18] sm:$0x3]
  %vm2092 = vcmask 80896
  %v2094 = vsel %vm2092, %v2085, 0
  %v2097 = vsel %vm1895, %v2089, 0
  %2099 = vmatprep.subr.mxu0 0.0
  %2100 = vmatpush1.msra.mxu0 0.0
  %2101 = vmatprep.subr.mxu0 0.0
  %2102 = vmatpush1.msra.mxu0 0.0
  %2103 = vmatprep.subr.mxu0 0.0
  %2104 = vmatpush1.msra.mxu0 0.0
  %2105 = vmatprep.subr.mxu0 0.0
  %2106 = vmatpush1.msra.mxu0 0.0
  %2107 = vmatprep.subr.mxu0 0.0
  %2108 = vmatpush1.msra.mxu0 0.0
  %2109 = vmatprep.subr.mxu0 0.0
  %2110 = vmatpush1.msra.mxu0 0.0
  %2111 = vmatprep.subr.mxu0 0.0
  %2112 = vmatpush1.msra.mxu0 0.0
  %2113 = vmatprep.subr.mxu0 0.0
  %2114 = vmatpush1.msra.mxu0 0.0
  %2115 = vmatprep.subr.mxu0 0.0
  %2116 = vmatpush1.msra.mxu0 0.0
  %2117 = vmatprep.subr.mxu0 0.0
  %2118 = vmatpush1.msra.mxu0 0.0
  %2119 = vmatprep.subr.mxu0 0.0
  %2120 = vmatpush1.msra.mxu0 0.0
  %2121 = vmatprep.subr.mxu0 0.0
  %2122 = vmatpush1.msra.mxu0 0.0
  %2123 = vmatprep.subr.mxu0 0.0
  %2124 = vmatpush1.msra.mxu0 0.0
  %2125 = vmatprep.subr.mxu0 0.0
  %2126 = vmatpush1.msra.mxu0 0.0
  %2127 = vmatprep.subr.mxu0 0.0
  %2128 = vmatpush1.msra.mxu0 %v2097
  %2129 = vmatprep.subr.mxu0 0.0
  %2130 = vmatpush1.msra.mxu0 %v2088
  %2131 = vmatprep.subr.mxu0 0.0
  %2132 = vmatpush2.msra.mxu0 0.0
  %2133 = vmatprep.subr.mxu0 0.0
  %2134 = vmatpush2.msra.mxu0 0.0
  %2135 = vmatprep.subr.mxu0 0.0
  %2136 = vmatpush2.msra.mxu0 0.0
  %2137 = vmatprep.subr.mxu0 0.0
  %2138 = vmatpush2.msra.mxu0 0.0
  %2139 = vmatprep.subr.mxu0 0.0
  %2140 = vmatpush2.msra.mxu0 0.0
  %2141 = vmatprep.subr.mxu0 0.0
  %2142 = vmatpush2.msra.mxu0 0.0
  %2143 = vmatprep.subr.mxu0 0.0
  %2144 = vmatpush2.msra.mxu0 0.0
  %2145 = vmatprep.subr.mxu0 0.0
  %2146 = vmatpush2.msra.mxu0 0.0
  %2147 = vmatprep.subr.mxu0 0.0
  %2148 = vmatpush2.msra.mxu0 0.0
  %2149 = vmatprep.subr.mxu0 0.0
  %2150 = vmatpush2.msra.mxu0 0.0
  %2151 = vmatprep.subr.mxu0 0.0
  %2152 = vmatpush2.msra.mxu0 0.0
  %2153 = vmatprep.subr.mxu0 0.0
  %2154 = vmatpush2.msra.mxu0 0.0
  %2155 = vmatprep.subr.mxu0 0.0
  %2156 = vmatpush2.msra.mxu0 0.0
  %2157 = vmatprep.subr.mxu0 0.0
  %2158 = vmatpush2.msra.mxu0 0.0
  %2159 = vmatprep.subr.mxu0 0.0
  %2160 = vmatpush2.msra.mxu0 0.0
  %2161 = vmatprep.subr.mxu0 0.0
  %2162 = vmatpush2.msra.mxu0 0.0
  %2163 = vmatprep.mubr.f32.mxu0 0.0
  %2164 = vmatmul.mubr.f32.gmra.mxu0 %v2094
  %v2165 = vpop.f32.mrf.mxu0
  %v2166 = vadd.f32 0.0, %v2165
  %v2167 = vpop.f32.mrf.mxu0
  %2168 = vdwg.mxu0
  %v2170 = vsel %vm2092, %v2087, 0
  %v2173 = vsel %vm1895, %v2091, 0
  %2175 = vmatprep.subr.mxu0 0.0
  %2176 = vmatpush1.msra.mxu0 0.0
  %2177 = vmatprep.subr.mxu0 0.0
  %2178 = vmatpush1.msra.mxu0 0.0
  %2179 = vmatprep.subr.mxu0 0.0
  %2180 = vmatpush1.msra.mxu0 0.0
  %2181 = vmatprep.subr.mxu0 0.0
  %2182 = vmatpush1.msra.mxu0 0.0
  %2183 = vmatprep.subr.mxu0 0.0
  %2184 = vmatpush1.msra.mxu0 0.0
  %2185 = vmatprep.subr.mxu0 0.0
  %2186 = vmatpush1.msra.mxu0 0.0
  %2187 = vmatprep.subr.mxu0 0.0
  %2188 = vmatpush1.msra.mxu0 0.0
  %2189 = vmatprep.subr.mxu0 0.0
  %2190 = vmatpush1.msra.mxu0 0.0
  %2191 = vmatprep.subr.mxu0 0.0
  %2192 = vmatpush1.msra.mxu0 0.0
  %2193 = vmatprep.subr.mxu0 0.0
  %2194 = vmatpush1.msra.mxu0 0.0
  %2195 = vmatprep.subr.mxu0 0.0
  %2196 = vmatpush1.msra.mxu0 0.0
  %2197 = vmatprep.subr.mxu0 0.0
  %2198 = vmatpush1.msra.mxu0 0.0
  %2199 = vmatprep.subr.mxu0 0.0
  %2200 = vmatpush1.msra.mxu0 0.0
  %2201 = vmatprep.subr.mxu0 0.0
  %2202 = vmatpush1.msra.mxu0 0.0
  %2203 = vmatprep.subr.mxu0 0.0
  %2204 = vmatpush1.msra.mxu0 %v2173
  %2205 = vmatprep.subr.mxu0 0.0
  %2206 = vmatpush1.msra.mxu0 %v2090
  %2207 = vmatprep.subr.mxu0 0.0
  %2208 = vmatpush2.msra.mxu0 0.0
  %2209 = vmatprep.subr.mxu0 0.0
  %2210 = vmatpush2.msra.mxu0 0.0
  %2211 = vmatprep.subr.mxu0 0.0
  %2212 = vmatpush2.msra.mxu0 0.0
  %2213 = vmatprep.subr.mxu0 0.0
  %2214 = vmatpush2.msra.mxu0 0.0
  %2215 = vmatprep.subr.mxu0 0.0
  %2216 = vmatpush2.msra.mxu0 0.0
  %2217 = vmatprep.subr.mxu0 0.0
  %2218 = vmatpush2.msra.mxu0 0.0
  %2219 = vmatprep.subr.mxu0 0.0
  %2220 = vmatpush2.msra.mxu0 0.0
  %2221 = vmatprep.subr.mxu0 0.0
  %2222 = vmatpush2.msra.mxu0 0.0
  %2223 = vmatprep.subr.mxu0 0.0
  %2224 = vmatpush2.msra.mxu0 0.0
  %2225 = vmatprep.subr.mxu0 0.0
  %2226 = vmatpush2.msra.mxu0 0.0
  %2227 = vmatprep.subr.mxu0 0.0
  %2228 = vmatpush2.msra.mxu0 0.0
  %2229 = vmatprep.subr.mxu0 0.0
  %2230 = vmatpush2.msra.mxu0 0.0
  %2231 = vmatprep.subr.mxu0 0.0
  %2232 = vmatpush2.msra.mxu0 0.0
  %2233 = vmatprep.subr.mxu0 0.0
  %2234 = vmatpush2.msra.mxu0 0.0
  %2235 = vmatprep.subr.mxu0 0.0
  %2236 = vmatpush2.msra.mxu0 0.0
  %2237 = vmatprep.subr.mxu0 0.0
  %2238 = vmatpush2.msra.mxu0 0.0
  %2239 = vmatprep.mubr.f32.mxu0 0.0
  %2240 = vmatmul.mubr.f32.gmra.mxu0 %v2170
  %v2241 = vpop.f32.mrf.mxu0
  %v2242 = vadd.f32 0.0, %v2241
  %v2243 = vpop.f32.mrf.mxu0
  %2244 = vdwg.mxu0
  %v2245 = vcombine.high %v1905, %v1905
  %v2247 = vunpack.c.l.s4 1983009808
  %v2248 = vunpack.c.0.s8 %v2247
  %v2249 = vlaneseq
  %v2250 = vshrl.u32 %v2249, 7
  %v2251 = vsub.s32 %v2248, %v2250
  %v2252 = vrot.slane %v1905, %v2251
  %v2254 = vunpack.c.l.s4 1983009808
  %v2255 = vunpack.c.0.s8 %v2254
  %v2256 = vlaneseq
  %v2257 = vshrl.u32 %v2256, 7
  %v2258 = vsub.s32 %v2255, %v2257
  %v2259 = vrot.slane %v2245, %v2258
  %v2260 = vcombine.high %v2252, %v2252
  %v2261 = vcombine.high %v1906, %v1906
  %v2263 = vunpack.c.l.s4 1983009808
  %v2264 = vunpack.c.0.s8 %v2263
  %v2265 = vlaneseq
  %v2266 = vshrl.u32 %v2265, 7
  %v2267 = vsub.s32 %v2264, %v2266
  %v2268 = vrot.slane %v1906, %v2267
  %v2270 = vunpack.c.l.s4 1983009808
  %v2271 = vunpack.c.0.s8 %v2270
  %v2272 = vlaneseq
  %v2273 = vshrl.u32 %v2272, 7
  %v2274 = vsub.s32 %v2271, %v2273
  %v2275 = vrot.slane %v2261, %v2274
  %v2276 = vcombine.high %v2268, %v2268
  %v2279 = vcombine.high %v2166, %v2166
  %v2281 = vunpack.c.l.s4 1983009808
  %v2282 = vunpack.c.0.s8 %v2281
  %v2283 = vlaneseq
  %v2284 = vshrl.u32 %v2283, 7
  %v2285 = vsub.s32 %v2282, %v2284
  %v2286 = vrot.slane %v2166, %v2285
  %v2288 = vunpack.c.l.s4 1983009808
  %v2289 = vunpack.c.0.s8 %v2288
  %v2290 = vlaneseq
  %v2291 = vshrl.u32 %v2290, 7
  %v2292 = vsub.s32 %v2289, %v2291
  %v2293 = vrot.slane %v2279, %v2292
  %v2294 = vcombine.high %v2286, %v2286
  %v2295 = vcombine.high %v2242, %v2242
  %v2297 = vunpack.c.l.s4 1983009808
  %v2298 = vunpack.c.0.s8 %v2297
  %v2299 = vlaneseq
  %v2300 = vshrl.u32 %v2299, 7
  %v2301 = vsub.s32 %v2298, %v2300
  %v2302 = vrot.slane %v2242, %v2301
  %v2304 = vunpack.c.l.s4 1983009808
  %v2305 = vunpack.c.0.s8 %v2304
  %v2306 = vlaneseq
  %v2307 = vshrl.u32 %v2306, 7
  %v2308 = vsub.s32 %v2305, %v2307
  %v2309 = vrot.slane %v2295, %v2308
  %v2310 = vcombine.high %v2302, %v2302
  %v2311 = vcombine.low %v2252, %v2260
  %v2312 = vcombine.low %v2259, %v2268
  %v2314 = vunpack.c.l.s4 1983009808
  %v2315 = vunpack.c.0.s8 %v2314
  %v2316 = vlaneseq
  %v2317 = vshrl.u32 %v2316, 7
  %v2318 = vsub.s32 %v2315, %v2317
  %v2319 = vrot.slane %v2311, %v2318
  %v2321 = vunpack.c.l.s4 1983009808
  %v2322 = vunpack.c.0.s8 %v2321
  %v2323 = vlaneseq
  %v2324 = vshrl.u32 %v2323, 7
  %v2325 = vsub.s32 %v2322, %v2324
  %v2326 = vrot.slane %v2312, %v2325
  %v2327 = vcombine.low %v2319, %v2326
  %v2328 = vcombine.low %v2276, %v2275
  %v2330 = vunpack.c.l.s4 1983009808
  %v2331 = vunpack.c.0.s8 %v2330
  %v2332 = vlaneseq
  %v2333 = vshrl.u32 %v2332, 7
  %v2334 = vsub.s32 %v2331, %v2333
  %v2335 = vrot.slane %v2328, %v2334
  %v2338 = vcombine.low %v2286, %v2294
  %v2340 = vunpack.c.l.s4 1983009808
  %v2341 = vunpack.c.0.s8 %v2340
  %v2342 = vlaneseq
  %v2343 = vshrl.u32 %v2342, 7
  %v2344 = vsub.s32 %v2341, %v2343
  %v2345 = vrot.slane %v2338, %v2344
  %v2346 = vcombine.low %v2345, %v2345
  %v2347 = vcombine.low %v2293, %v2302
  %v2348 = vcombine.low %v2310, %v2309
  %v2350 = vunpack.c.l.s4 1983009808
  %v2351 = vunpack.c.0.s8 %v2350
  %v2352 = vlaneseq
  %v2353 = vshrl.u32 %v2352, 7
  %v2354 = vsub.s32 %v2351, %v2353
  %v2355 = vrot.slane %v2347, %v2354
  %v2357 = vunpack.c.l.s4 1983009808
  %v2358 = vunpack.c.0.s8 %v2357
  %v2359 = vlaneseq
  %v2360 = vshrl.u32 %v2359, 7
  %v2361 = vsub.s32 %v2358, %v2360
  %v2362 = vrot.slane %v2348, %v2361
  %v2363 = vcombine.low %v2355, %v2362
  %2364 = vrot.lane.b32.xlu0 %v2346, 96
  %v2365 = vpop.permute.xlu0 %2364
  %2366 = vrot.lane.b32.xlu0 %v2363, 96
  %v2367 = vpop.permute.xlu0 %2366
  %v2370 = vsel %vm1901, %v2335, %v2365
  %v2371 = vtanh.pop %v2327
  %v2372 = vtanh.pop %v2370
  %v2373 = vtanh.pop %v2367
  %v2374 = vlaneseq
  %v2375 = vshrl.u32 %v2374, 7
  %v2376 = vsub.s32 0, %v2375
  %v2377 = vrot.slane %v51, %v2376
  %2381 = vrot.lane.b32.xlu0 %v2371, 32
  %v2382 = vpop.permute.xlu0 %2381
  %2383 = vrot.lane.b32.xlu0 %v2372, 32
  %v2384 = vpop.permute.xlu0 %2383
  %2385 = vrot.lane.b32.xlu0 %v2373, 32
  %v2386 = vpop.permute.xlu0 %2385
  %v2387 = vsel %vm237, %v2382, 0
  %v2389 = vsel %vm237, %v2384, 0
  %v2391 = vsel %vm237, %v2386, 0
  %2393 = vmatprep.subr.mxu0 0.0
  %2394 = vmatpush1.msra.mxu0 0.0
  %2395 = vmatprep.subr.mxu0 0.0
  %2396 = vmatpush1.msra.mxu0 0.0
  %2397 = vmatprep.subr.mxu0 0.0
  %2398 = vmatpush1.msra.mxu0 0.0
  %2399 = vmatprep.subr.mxu0 0.0
  %2400 = vmatpush1.msra.mxu0 0.0
  %2401 = vmatprep.subr.mxu0 0.0
  %2402 = vmatpush1.msra.mxu0 0.0
  %2403 = vmatprep.subr.mxu0 0.0
  %2404 = vmatpush1.msra.mxu0 0.0
  %2405 = vmatprep.subr.mxu0 0.0
  %2406 = vmatpush1.msra.mxu0 0.0
  %2407 = vmatprep.subr.mxu0 0.0
  %2408 = vmatpush1.msra.mxu0 0.0
  %2409 = vmatprep.subr.mxu0 0.0
  %2410 = vmatpush1.msra.mxu0 0.0
  %2411 = vmatprep.subr.mxu0 0.0
  %2412 = vmatpush1.msra.mxu0 0.0
  %2413 = vmatprep.subr.mxu0 0.0
  %2414 = vmatpush1.msra.mxu0 0.0
  %2415 = vmatprep.subr.mxu0 0.0
  %2416 = vmatpush1.msra.mxu0 0.0
  %2417 = vmatprep.subr.mxu0 0.0
  %2418 = vmatpush1.msra.mxu0 %v55
  %2419 = vmatprep.subr.mxu0 0.0
  %2420 = vmatpush1.msra.mxu0 %v54
  %2421 = vmatprep.subr.mxu0 0.0
  %2422 = vmatpush1.msra.mxu0 %v53
  %2423 = vmatprep.subr.mxu0 0.0
  %2424 = vmatpush1.msra.mxu0 %v52
  %2425 = vmatprep.subr.mxu0 0.0
  %2426 = vmatpush2.msra.mxu0 0.0
  %2427 = vmatprep.subr.mxu0 0.0
  %2428 = vmatpush2.msra.mxu0 0.0
  %2429 = vmatprep.subr.mxu0 0.0
  %2430 = vmatpush2.msra.mxu0 0.0
  %2431 = vmatprep.subr.mxu0 0.0
  %2432 = vmatpush2.msra.mxu0 0.0
  %2433 = vmatprep.subr.mxu0 0.0
  %2434 = vmatpush2.msra.mxu0 0.0
  %2435 = vmatprep.subr.mxu0 0.0
  %2436 = vmatpush2.msra.mxu0 0.0
  %2437 = vmatprep.subr.mxu0 0.0
  %2438 = vmatpush2.msra.mxu0 0.0
  %2439 = vmatprep.subr.mxu0 0.0
  %2440 = vmatpush2.msra.mxu0 0.0
  %2441 = vmatprep.subr.mxu0 0.0
  %2442 = vmatpush2.msra.mxu0 0.0
  %2443 = vmatprep.subr.mxu0 0.0
  %2444 = vmatpush2.msra.mxu0 0.0
  %2445 = vmatprep.subr.mxu0 0.0
  %2446 = vmatpush2.msra.mxu0 0.0
  %2447 = vmatprep.subr.mxu0 0.0
  %2448 = vmatpush2.msra.mxu0 0.0
  %2449 = vmatprep.subr.mxu0 0.0
  %2450 = vmatpush2.msra.mxu0 0.0
  %2451 = vmatprep.subr.mxu0 0.0
  %2452 = vmatpush2.msra.mxu0 0.0
  %2453 = vmatprep.subr.mxu0 0.0
  %2454 = vmatpush2.msra.mxu0 0.0
  %2455 = vmatprep.subr.mxu0 0.0
  %2456 = vmatpush2.msra.mxu0 0.0
  %2457 = vmatprep.mubr.f32.mxu0 0.0
  %2458 = vmatmul.mubr.f32.gmra.mxu0 %v2387
  %v2459 = vpop.f32.mrf.mxu0
  %v2460 = vadd.f32 %v2377, %v2459
  %v2461 = vpop.f32.mrf.mxu0
  %2462 = vmatprep.mubr.f32.mxu0 0.0
  %2463 = vmatmul.mubr.f32.gmra.mxu0 %v2389
  %v2464 = vpop.f32.mrf.mxu0
  %v2465 = vadd.f32 %v2377, %v2464
  %v2466 = vpop.f32.mrf.mxu0
  %2467 = vmatprep.mubr.f32.mxu0 0.0
  %2468 = vmatmul.mubr.f32.gmra.mxu0 %v2391
  %v2469 = vpop.f32.mrf.mxu0
  %v2470 = vadd.f32 %v2377, %v2469
  %v2471 = vpop.f32.mrf.mxu0
  %2472 = vdwg.mxu0
  %2473 = vmax.xlane.f32.xlu0 %v2460
  %v2474 = vpop.xlane.xlu0 %2473
  %2475 = vmax.xlane.f32.xlu0 %v2465
  %v2476 = vpop.xlane.xlu0 %2475
  %2477 = vmax.xlane.f32.xlu0 %v2470
  %v2478 = vpop.xlane.xlu0 %2477
  %v2479 = vsub.f32 %v2460, %v2474
  %v2480 = vsub.f32 %v2465, %v2476
  %v2481 = vsub.f32 %v2470, %v2478
  %v2482 = vmul.f32 %v2479, 1.442695
  %v2483 = vpow.pop %v2482
  %v2484 = vmul.f32 %v2480, 1.442695
  %v2485 = vpow.pop %v2484
  %v2486 = vmul.f32 %v2481, 1.442695
  %v2487 = vpow.pop %v2486
  %2488 = vadd.xlane.f32.xlu0 %v2483
  %v2489 = vpop.xlane.xlu0 %2488
  %2490 = vadd.xlane.f32.xlu0 %v2485
  %v2491 = vpop.xlane.xlu0 %2490
  %2492 = vadd.xlane.f32.xlu0 %v2487
  %v2493 = vpop.xlane.xlu0 %2492
  %v2494 = vlog2.pop %v2489
  %v2495 = vmul.f32 %v2494, 0.6931472
  %v2496 = vlog2.pop %v2491
  %v2497 = vmul.f32 %v2496, 0.6931472
  %v2498 = vlog2.pop %v2493
  %v2499 = vmul.f32 %v2498, 0.6931472
  %v2500 = vadd.f32 %v2474, %v2495
  %v2501 = vadd.f32 %v2476, %v2497
  %v2502 = vadd.f32 %v2478, %v2499
  %v2503 = vsub.f32 %v2460, %v2500
  %v2504 = vsub.f32 %v2465, %v2501
  %v2505 = vsub.f32 %v2470, %v2502
  %2506 = vst [vmem:[%s7] sm:$0xff] %v2503
  %2507 = vst [vmem:[%s7 + $0x8] sm:$0xff] %v2504
  %2508 = vst [vmem:[%s7 + $0x10] sm:$0xff] %v2505
  // Predicated region
  $region30: #{decoder_forward.1} parent=0 // pred_check
    _
  $region31: #{decoder_forward.1} parent=0 // pred_check_branch
    %2510 = sbr.rel (0) target = $region33
  $region32: #{decoder_forward.1} parent=0 // pred_region
    _
  $region33: #{decoder_forward.1} parent=0 // pred_fallthru
    _
  // Predicated region
  $region34: #{decoder_forward.1} parent=0 // pred_check
    _
  $region35: #{decoder_forward.1} parent=0 // pred_check_branch
    %2512 = sbr.rel (0) target = $region37
  $region36: #{decoder_forward.1} parent=0 // pred_region
    _
  $region37: #{decoder_forward.1} parent=0 // pred_fallthru
    _

</llo_original>
